<compile_context>
chip_gen: v6e
topology: v6e:2x2x1
jax: 0.10.0
libtpu: 0.0.40
codegen_flags: <defaults>
</compile_context>

<pallas_src>
import functools

import jax
import jax.numpy as jnp
import numpy as np
from jax.experimental import pallas as pl
from jax.experimental.pallas import tpu as pltpu

LN_EPS = 1e-5


# ---------------------------------------------------------------------------
# Fused kernel: one grid step == one batch element.
#   x_ref     : (1, dim, S)   f32   (NCHW with freq*time flattened to S)
#   g1/b1/g2/b2/bqkv/bout : (1, D) f32 row vectors
#   wqkv_ref  : (dim, 3*dim)  bf16
#   wout_ref  : (dim, dim)    bf16
#   o_ref     : (1, dim, S)   f32
# ---------------------------------------------------------------------------
def fta_kernel(x_ref, g1_ref, b1_ref, wqkv_ref, bqkv_ref,
               g2_ref, b2_ref, wout_ref, bout_ref, o_ref, *, heads, scale):
    dim = x_ref.shape[1]
    head_dim = dim // heads

    # NCHW -> channels-last, entirely inside VMEM (no HBM transpose).
    x_cl = x_ref[0].T                                     # (S, dim) f32

    # ---- LayerNorm 1 (f32 math) ----
    mu = jnp.mean(x_cl, axis=-1, keepdims=True)
    var = jnp.mean((x_cl - mu) ** 2, axis=-1, keepdims=True)
    xn = (x_cl - mu) * jax.lax.rsqrt(var + LN_EPS)
    xn = xn * g1_ref[...] + b1_ref[...]

    # ---- QKV projection: bf16 MXU inputs, f32 accumulation ----
    qkv = jnp.dot(xn.astype(jnp.bfloat16), wqkv_ref[...],
                  preferred_element_type=jnp.float32) + bqkv_ref[...]   # (S, 3*dim)

    q = qkv[:, :dim]
    k = qkv[:, dim:2 * dim]
    v = qkv[:, 2 * dim:]

    # ---- attention: all heads handled in this one grid step ----
    head_outs = []
    for h in range(heads):                                 # static unroll (heads is small)
        sl = slice(h * head_dim, (h + 1) * head_dim)
        qh = (q[:, sl] * scale).astype(jnp.bfloat16)       # scale q, not the (S,S) scores
        kh = k[:, sl].astype(jnp.bfloat16)
        vh = v[:, sl].astype(jnp.bfloat16)
        s = jnp.einsum("qd,kd->qk", qh, kh,
                       preferred_element_type=jnp.float32)               # (S, S) f32
        m = jnp.max(s, axis=-1, keepdims=True)
        p = jnp.exp(s - m)                                               # f32 softmax
        p = p * pl.reciprocal(jnp.sum(p, axis=-1, keepdims=True), approx=True)
        head_outs.append(jnp.dot(p.astype(jnp.bfloat16), vh,
                                 preferred_element_type=jnp.float32))    # (S, Dh) f32
    attn_out = jnp.concatenate(head_outs, axis=-1)                       # (S, dim)

    # ---- LayerNorm 2 + to_out + residual (residual added in f32) ----
    mu2 = jnp.mean(attn_out, axis=-1, keepdims=True)
    var2 = jnp.mean((attn_out - mu2) ** 2, axis=-1, keepdims=True)
    xn2 = (attn_out - mu2) * jax.lax.rsqrt(var2 + LN_EPS)
    xn2 = xn2 * g2_ref[...] + b2_ref[...]
    y = jnp.dot(xn2.astype(jnp.bfloat16), wout_ref[...],
                preferred_element_type=jnp.float32) + bout_ref[...] + x_cl

    # channels-last -> NCHW on the way out (still in VMEM).
    o_ref[0] = y.T                                         # (dim, S)


# ---------------------------------------------------------------------------
# Wrapper: only free reshapes (merge/split of trailing contiguous dims) in XLA.
# ---------------------------------------------------------------------------
def frequency_time_attention(x, params, *, heads):
    """x: (b, dim, f, t) float32 -> (b, dim, f, t) float32."""
    b, dim, f, t = x.shape
    seq = f * t
    head_dim = dim // heads
    scale = head_dim ** -0.5

    x3 = x.reshape(b, dim, seq)                            # free reshape, stays NCHW

    # Cast the big matmul weights once to bf16 (MXU input dtype);
    # LN params and biases stay f32 for the f32 VPU math.
    # NOTE(v7x): for much larger dim, tile the Dout axis of these weight
    # BlockSpecs (or keep them bf16) rather than a full resident f32 block —
    # v7x only has 64 MiB VMEM and pipeline blocks are double-buffered.
    wqkv = params["w_qkv"].astype(jnp.bfloat16)
    wout = params["w_out"].astype(jnp.bfloat16)

    out = pl.pallas_call(
        functools.partial(fta_kernel, heads=heads, scale=scale),
        out_shape=jax.ShapeDtypeStruct((b, dim, seq), jnp.float32),
        grid=(b,),
        in_specs=[
            pl.BlockSpec((1, dim, seq), lambda i: (i, 0, 0)),   # x (per-batch block)
            pl.BlockSpec((1, dim), lambda i: (0, 0)),           # g1
            pl.BlockSpec((1, dim), lambda i: (0, 0)),           # b1
            pl.BlockSpec((dim, 3 * dim), lambda i: (0, 0)),     # w_qkv (bf16, resident)
            pl.BlockSpec((1, 3 * dim), lambda i: (0, 0)),       # b_qkv
            pl.BlockSpec((1, dim), lambda i: (0, 0)),           # g2
            pl.BlockSpec((1, dim), lambda i: (0, 0)),           # b2
            pl.BlockSpec((dim, dim), lambda i: (0, 0)),         # w_out (bf16, resident)
            pl.BlockSpec((1, dim), lambda i: (0, 0)),           # b_out
        ],
        out_specs=pl.BlockSpec((1, dim, seq), lambda i: (i, 0, 0)),
        compiler_params=pltpu.CompilerParams(dimension_semantics=("parallel",)),
    )(x3, params["g1"], params["b1"], wqkv, params["b_qkv"],
      params["g2"], params["b2"], wout, params["b_out"])

    return out.reshape(b, dim, f, t)                       # free reshape back to NCHW


# ---------------------------------------------------------------------------
# Pure-JAX f32 reference (mirrors the PyTorch forward, dropout = identity)
# ---------------------------------------------------------------------------
def reference_forward(x, params, *, heads):
    b, dim, f, t = x.shape
    head_dim = dim // heads
    scale = head_dim ** -0.5

    def layernorm(u, g, bta):
        mu = jnp.mean(u, axis=-1, keepdims=True)
        var = jnp.mean((u - mu) ** 2, axis=-1, keepdims=True)
        return (u - mu) / jnp.sqrt(var + LN_EPS) * g + bta

    x_cl = jnp.transpose(x, (0, 2, 3, 1))
    xn = layernorm(x_cl, params["g1"][0], params["b1"][0])
    qkv = xn @ params["w_qkv"] + params["b_qkv"][0]
    q, k, v = jnp.split(qkv, 3, axis=-1)

    def to_heads(u):
        u = u.reshape(b, f, t, heads, head_dim)
        u = jnp.transpose(u, (0, 3, 1, 2, 4))
        return u.reshape(b * heads, f * t, head_dim)

    q, k, v = to_heads(q), to_heads(k), to_heads(v)
    s = jnp.einsum("bqd,bkd->bqk", q, k) * scale
    a = jax.nn.softmax(s, axis=-1)
    o = jnp.einsum("bqk,bkd->bqd", a, v)
    o = o.reshape(b, heads, f, t, head_dim)
    o = jnp.transpose(o, (0, 2, 3, 1, 4)).reshape(b, f, t, dim)
    o = layernorm(o, params["g2"][0], params["b2"][0])
    o = o @ params["w_out"] + params["b_out"][0]
    o = o + x_cl
    return jnp.transpose(o, (0, 3, 1, 2))


# ---------------------------------------------------------------------------
if __name__ == "__main__":
    # Small shapes consistent with the module: (batch, channels=dim, freq, time)
    b, dim, f, t = 2, 64, 8, 8
    heads = 4

    key = jax.random.PRNGKey(0)
    kx, k1, k2, k3, k4, k5, k6, k7, k8 = jax.random.split(key, 9)

    x = jax.random.normal(kx, (b, dim, f, t), dtype=jnp.float32)

    # PyTorch Linear weight is (out, in); we store the transposed (in, out)
    # layout used directly by the kernel's matmuls.
    params = {
        "g1": (1.0 + 0.02 * jax.random.normal(k1, (1, dim))).astype(jnp.float32),
        "b1": (0.02 * jax.random.normal(k2, (1, dim))).astype(jnp.float32),
        "w_qkv": (0.05 * jax.random.normal(k3, (dim, 3 * dim))).astype(jnp.float32),
        "b_qkv": (0.02 * jax.random.normal(k4, (1, 3 * dim))).astype(jnp.float32),
        "g2": (1.0 + 0.02 * jax.random.normal(k5, (1, dim))).astype(jnp.float32),
        "b2": (0.02 * jax.random.normal(k6, (1, dim))).astype(jnp.float32),
        "w_out": (0.05 * jax.random.normal(k7, (dim, dim))).astype(jnp.float32),
        "b_out": (0.02 * jax.random.normal(k8, (1, dim))).astype(jnp.float32),
    }

    fwd = jax.jit(functools.partial(frequency_time_attention, heads=heads))
    out = jax.block_until_ready(fwd(x, params))

    ref = jax.block_until_ready(reference_forward(x, params, heads=heads))

    assert out.shape == (b, dim, f, t), out.shape
    # Kernel uses bf16 MXU inputs with f32 accumulation (per perf review), so
    # compare against the pure-f32 reference with a mixed-precision tolerance.
    np.testing.assert_allclose(np.asarray(out), np.asarray(ref), rtol=5e-2, atol=5e-2)

    print("KERNEL_OK")
</pallas_src>

<mosaic_0001>
module attributes {stable_mosaic.version = 11 : i64} {
  func.func @fta_kernel(%arg0: i32, %arg1: memref<1x64x64xf32, #tpu.memory_space<vmem>>, %arg2: memref<1x64xf32, #tpu.memory_space<vmem>>, %arg3: memref<1x64xf32, #tpu.memory_space<vmem>>, %arg4: memref<64x192xbf16, #tpu.memory_space<vmem>>, %arg5: memref<1x192xf32, #tpu.memory_space<vmem>>, %arg6: memref<1x64xf32, #tpu.memory_space<vmem>>, %arg7: memref<1x64xf32, #tpu.memory_space<vmem>>, %arg8: memref<64x64xbf16, #tpu.memory_space<vmem>>, %arg9: memref<1x64xf32, #tpu.memory_space<vmem>>, %arg10: memref<1x64x64xf32, #tpu.memory_space<vmem>>) attributes {dimension_semantics = [#tpu.dimension_semantics<parallel>], iteration_bounds = array<i64: 2>, scalar_prefetch = 0 : i64, scratch_operands = 0 : i64, tpu.core_type = #tpu.core_type<tc>, window_params = [{transform_indices = @transform_0, window_bounds = array<i64: 1, 64, 64>}, {pipeline_mode = #tpu.pipeline_mode<synchronous>, transform_indices = @transform_1, window_bounds = array<i64: 1, 64>}, {pipeline_mode = #tpu.pipeline_mode<synchronous>, transform_indices = @transform_2, window_bounds = array<i64: 1, 64>}, {pipeline_mode = #tpu.pipeline_mode<synchronous>, transform_indices = @transform_3, window_bounds = array<i64: 64, 192>}, {pipeline_mode = #tpu.pipeline_mode<synchronous>, transform_indices = @transform_4, window_bounds = array<i64: 1, 192>}, {pipeline_mode = #tpu.pipeline_mode<synchronous>, transform_indices = @transform_5, window_bounds = array<i64: 1, 64>}, {pipeline_mode = #tpu.pipeline_mode<synchronous>, transform_indices = @transform_6, window_bounds = array<i64: 1, 64>}, {pipeline_mode = #tpu.pipeline_mode<synchronous>, transform_indices = @transform_7, window_bounds = array<i64: 64, 64>}, {pipeline_mode = #tpu.pipeline_mode<synchronous>, transform_indices = @transform_8, window_bounds = array<i64: 1, 64>}, {transform_indices = @transform_9, window_bounds = array<i64: 1, 64, 64>}]} {
    %c0 = arith.constant 0 : index
    %c0_0 = arith.constant 0 : index
    %c0_1 = arith.constant 0 : index
    %0 = vector.load %arg1[%c0, %c0_0, %c0_1] : memref<1x64x64xf32, #tpu.memory_space<vmem>>, vector<1x64x64xf32>
    %1 = vector.shape_cast %0 : vector<1x64x64xf32> to vector<64x64xf32>
    %2 = tpu.transpose %1, [1, 0] : vector<64x64xf32> -> vector<64x64xf32>
    %cst = arith.constant dense<0.000000e+00> : vector<64xf32>
    %3 = vector.multi_reduction <add>, %2, %cst [1] : vector<64x64xf32> to vector<64xf32>
    %4 = vector.shape_cast %3 : vector<64xf32> to vector<64x1xf32>
    %cst_2 = arith.constant 6.400000e+01 : f32
    %5 = vector.broadcast %cst_2 : f32 to vector<64x1xf32>
    %6 = arith.divf %4, %5 : vector<64x1xf32>
    %7 = vector.broadcast %6 : vector<64x1xf32> to vector<64x64xf32>
    %8 = arith.subf %2, %7 : vector<64x64xf32>
    %9 = arith.mulf %8, %8 : vector<64x64xf32>
    %cst_3 = arith.constant dense<0.000000e+00> : vector<64xf32>
    %10 = vector.multi_reduction <add>, %9, %cst_3 [1] : vector<64x64xf32> to vector<64xf32>
    %11 = vector.shape_cast %10 : vector<64xf32> to vector<64x1xf32>
    %cst_4 = arith.constant 6.400000e+01 : f32
    %12 = vector.broadcast %cst_4 : f32 to vector<64x1xf32>
    %13 = arith.divf %11, %12 : vector<64x1xf32>
    %14 = vector.broadcast %6 : vector<64x1xf32> to vector<64x64xf32>
    %15 = arith.subf %2, %14 : vector<64x64xf32>
    %cst_5 = arith.constant 9.99999974E-6 : f32
    %16 = vector.broadcast %cst_5 : f32 to vector<64x1xf32>
    %17 = arith.addf %13, %16 : vector<64x1xf32>
    %18 = math.rsqrt %17 : vector<64x1xf32>
    %19 = vector.broadcast %18 : vector<64x1xf32> to vector<64x64xf32>
    %20 = arith.mulf %15, %19 : vector<64x64xf32>
    %c0_6 = arith.constant 0 : index
    %c0_7 = arith.constant 0 : index
    %21 = vector.load %arg2[%c0_6, %c0_7] : memref<1x64xf32, #tpu.memory_space<vmem>>, vector<1x64xf32>
    %22 = vector.broadcast %21 : vector<1x64xf32> to vector<64x64xf32>
    %23 = arith.mulf %20, %22 : vector<64x64xf32>
    %c0_8 = arith.constant 0 : index
    %c0_9 = arith.constant 0 : index
    %24 = vector.load %arg3[%c0_8, %c0_9] : memref<1x64xf32, #tpu.memory_space<vmem>>, vector<1x64xf32>
    %25 = vector.broadcast %24 : vector<1x64xf32> to vector<64x64xf32>
    %26 = arith.addf %23, %25 : vector<64x64xf32>
    %27 = arith.truncf %26 : vector<64x64xf32> to vector<64x64xbf16>
    %c0_10 = arith.constant 0 : index
    %c0_11 = arith.constant 0 : index
    %28 = vector.load %arg4[%c0_10, %c0_11] : memref<64x192xbf16, #tpu.memory_space<vmem>>, vector<64x192xbf16>
    %cst_12 = arith.constant dense<0.000000e+00> : vector<64x192xf32>
    %29 = tpu.matmul %27, %28, %cst_12 {dimension_numbers = #tpu.dot_dimension_numbers<[1], [0], [0], [1], [0, 0, 1, 1], [], []>} : vector<64x64xbf16>, vector<64x192xbf16>, vector<64x192xf32> -> vector<64x192xf32>
    %c0_13 = arith.constant 0 : index
    %c0_14 = arith.constant 0 : index
    %30 = vector.load %arg5[%c0_13, %c0_14] : memref<1x192xf32, #tpu.memory_space<vmem>>, vector<1x192xf32>
    %31 = vector.broadcast %30 : vector<1x192xf32> to vector<64x192xf32>
    %32 = arith.addf %29, %31 : vector<64x192xf32>
    %33 = vector.extract_strided_slice %32 {offsets = [0, 0], sizes = [64, 64], strides = [1, 1]} : vector<64x192xf32> to vector<64x64xf32>
    %34 = vector.extract_strided_slice %32 {offsets = [0, 64], sizes = [64, 64], strides = [1, 1]} : vector<64x192xf32> to vector<64x64xf32>
    %35 = vector.extract_strided_slice %32 {offsets = [0, 128], sizes = [64, 64], strides = [1, 1]} : vector<64x192xf32> to vector<64x64xf32>
    %36 = vector.extract_strided_slice %33 {offsets = [0, 0], sizes = [64, 16], strides = [1, 1]} : vector<64x64xf32> to vector<64x16xf32>
    %cst_15 = arith.constant 2.500000e-01 : f32
    %37 = vector.broadcast %cst_15 : f32 to vector<64x16xf32>
    %38 = arith.mulf %36, %37 : vector<64x16xf32>
    %39 = arith.truncf %38 : vector<64x16xf32> to vector<64x16xbf16>
    %40 = vector.extract_strided_slice %34 {offsets = [0, 0], sizes = [64, 16], strides = [1, 1]} : vector<64x64xf32> to vector<64x16xf32>
    %41 = arith.truncf %40 : vector<64x16xf32> to vector<64x16xbf16>
    %42 = vector.extract_strided_slice %35 {offsets = [0, 0], sizes = [64, 16], strides = [1, 1]} : vector<64x64xf32> to vector<64x16xf32>
    %43 = arith.truncf %42 : vector<64x16xf32> to vector<64x16xbf16>
    "tpu.trace_start"() <{level = 10 : i32, message = "qd,kd->qk"}> : () -> ()
    %cst_16 = arith.constant dense<0.000000e+00> : vector<64x64xf32>
    %44 = tpu.matmul %39, %41, %cst_16 {dimension_numbers = #tpu.dot_dimension_numbers<[1], [1], [0], [0], [0, 0, 1, 0], [], []>} : vector<64x16xbf16>, vector<64x16xbf16>, vector<64x64xf32> -> vector<64x64xf32>
    "tpu.trace_stop"() : () -> ()
    %cst_17 = arith.constant dense<0xFF800000> : vector<64xf32>
    %45 = vector.multi_reduction <maximumf>, %44, %cst_17 [1] : vector<64x64xf32> to vector<64xf32>
    %46 = vector.shape_cast %45 : vector<64xf32> to vector<64x1xf32>
    %47 = vector.broadcast %46 : vector<64x1xf32> to vector<64x64xf32>
    %48 = arith.subf %44, %47 : vector<64x64xf32>
    %49 = math.exp %48 : vector<64x64xf32>
    %cst_18 = arith.constant dense<0.000000e+00> : vector<64xf32>
    %50 = vector.multi_reduction <add>, %49, %cst_18 [1] : vector<64x64xf32> to vector<64xf32>
    %51 = vector.shape_cast %50 : vector<64xf32> to vector<64x1xf32>
    %52 = tpu.reciprocal %51 {approx = true} : vector<64x1xf32> -> vector<64x1xf32>
    %53 = vector.broadcast %52 : vector<64x1xf32> to vector<64x64xf32>
    %54 = arith.mulf %49, %53 : vector<64x64xf32>
    %55 = arith.truncf %54 : vector<64x64xf32> to vector<64x64xbf16>
    %cst_19 = arith.constant dense<0.000000e+00> : vector<64x16xf32>
    %56 = tpu.matmul %55, %43, %cst_19 {dimension_numbers = #tpu.dot_dimension_numbers<[1], [0], [0], [1], [0, 0, 1, 1], [], []>} : vector<64x64xbf16>, vector<64x16xbf16>, vector<64x16xf32> -> vector<64x16xf32>
    %57 = vector.extract_strided_slice %33 {offsets = [0, 16], sizes = [64, 16], strides = [1, 1]} : vector<64x64xf32> to vector<64x16xf32>
    %cst_20 = arith.constant 2.500000e-01 : f32
    %58 = vector.broadcast %cst_20 : f32 to vector<64x16xf32>
    %59 = arith.mulf %57, %58 : vector<64x16xf32>
    %60 = arith.truncf %59 : vector<64x16xf32> to vector<64x16xbf16>
    %61 = vector.extract_strided_slice %34 {offsets = [0, 16], sizes = [64, 16], strides = [1, 1]} : vector<64x64xf32> to vector<64x16xf32>
    %62 = arith.truncf %61 : vector<64x16xf32> to vector<64x16xbf16>
    %63 = vector.extract_strided_slice %35 {offsets = [0, 16], sizes = [64, 16], strides = [1, 1]} : vector<64x64xf32> to vector<64x16xf32>
    %64 = arith.truncf %63 : vector<64x16xf32> to vector<64x16xbf16>
    "tpu.trace_start"() <{level = 10 : i32, message = "qd,kd->qk"}> : () -> ()
    %cst_21 = arith.constant dense<0.000000e+00> : vector<64x64xf32>
    %65 = tpu.matmul %60, %62, %cst_21 {dimension_numbers = #tpu.dot_dimension_numbers<[1], [1], [0], [0], [0, 0, 1, 0], [], []>} : vector<64x16xbf16>, vector<64x16xbf16>, vector<64x64xf32> -> vector<64x64xf32>
    "tpu.trace_stop"() : () -> ()
    %cst_22 = arith.constant dense<0xFF800000> : vector<64xf32>
    %66 = vector.multi_reduction <maximumf>, %65, %cst_22 [1] : vector<64x64xf32> to vector<64xf32>
    %67 = vector.shape_cast %66 : vector<64xf32> to vector<64x1xf32>
    %68 = vector.broadcast %67 : vector<64x1xf32> to vector<64x64xf32>
    %69 = arith.subf %65, %68 : vector<64x64xf32>
    %70 = math.exp %69 : vector<64x64xf32>
    %cst_23 = arith.constant dense<0.000000e+00> : vector<64xf32>
    %71 = vector.multi_reduction <add>, %70, %cst_23 [1] : vector<64x64xf32> to vector<64xf32>
    %72 = vector.shape_cast %71 : vector<64xf32> to vector<64x1xf32>
    %73 = tpu.reciprocal %72 {approx = true} : vector<64x1xf32> -> vector<64x1xf32>
    %74 = vector.broadcast %73 : vector<64x1xf32> to vector<64x64xf32>
    %75 = arith.mulf %70, %74 : vector<64x64xf32>
    %76 = arith.truncf %75 : vector<64x64xf32> to vector<64x64xbf16>
    %cst_24 = arith.constant dense<0.000000e+00> : vector<64x16xf32>
    %77 = tpu.matmul %76, %64, %cst_24 {dimension_numbers = #tpu.dot_dimension_numbers<[1], [0], [0], [1], [0, 0, 1, 1], [], []>} : vector<64x64xbf16>, vector<64x16xbf16>, vector<64x16xf32> -> vector<64x16xf32>
    %78 = vector.extract_strided_slice %33 {offsets = [0, 32], sizes = [64, 16], strides = [1, 1]} : vector<64x64xf32> to vector<64x16xf32>
    %cst_25 = arith.constant 2.500000e-01 : f32
    %79 = vector.broadcast %cst_25 : f32 to vector<64x16xf32>
    %80 = arith.mulf %78, %79 : vector<64x16xf32>
    %81 = arith.truncf %80 : vector<64x16xf32> to vector<64x16xbf16>
    %82 = vector.extract_strided_slice %34 {offsets = [0, 32], sizes = [64, 16], strides = [1, 1]} : vector<64x64xf32> to vector<64x16xf32>
    %83 = arith.truncf %82 : vector<64x16xf32> to vector<64x16xbf16>
    %84 = vector.extract_strided_slice %35 {offsets = [0, 32], sizes = [64, 16], strides = [1, 1]} : vector<64x64xf32> to vector<64x16xf32>
    %85 = arith.truncf %84 : vector<64x16xf32> to vector<64x16xbf16>
    "tpu.trace_start"() <{level = 10 : i32, message = "qd,kd->qk"}> : () -> ()
    %cst_26 = arith.constant dense<0.000000e+00> : vector<64x64xf32>
    %86 = tpu.matmul %81, %83, %cst_26 {dimension_numbers = #tpu.dot_dimension_numbers<[1], [1], [0], [0], [0, 0, 1, 0], [], []>} : vector<64x16xbf16>, vector<64x16xbf16>, vector<64x64xf32> -> vector<64x64xf32>
    "tpu.trace_stop"() : () -> ()
    %cst_27 = arith.constant dense<0xFF800000> : vector<64xf32>
    %87 = vector.multi_reduction <maximumf>, %86, %cst_27 [1] : vector<64x64xf32> to vector<64xf32>
    %88 = vector.shape_cast %87 : vector<64xf32> to vector<64x1xf32>
    %89 = vector.broadcast %88 : vector<64x1xf32> to vector<64x64xf32>
    %90 = arith.subf %86, %89 : vector<64x64xf32>
    %91 = math.exp %90 : vector<64x64xf32>
    %cst_28 = arith.constant dense<0.000000e+00> : vector<64xf32>
    %92 = vector.multi_reduction <add>, %91, %cst_28 [1] : vector<64x64xf32> to vector<64xf32>
    %93 = vector.shape_cast %92 : vector<64xf32> to vector<64x1xf32>
    %94 = tpu.reciprocal %93 {approx = true} : vector<64x1xf32> -> vector<64x1xf32>
    %95 = vector.broadcast %94 : vector<64x1xf32> to vector<64x64xf32>
    %96 = arith.mulf %91, %95 : vector<64x64xf32>
    %97 = arith.truncf %96 : vector<64x64xf32> to vector<64x64xbf16>
    %cst_29 = arith.constant dense<0.000000e+00> : vector<64x16xf32>
    %98 = tpu.matmul %97, %85, %cst_29 {dimension_numbers = #tpu.dot_dimension_numbers<[1], [0], [0], [1], [0, 0, 1, 1], [], []>} : vector<64x64xbf16>, vector<64x16xbf16>, vector<64x16xf32> -> vector<64x16xf32>
    %99 = vector.extract_strided_slice %33 {offsets = [0, 48], sizes = [64, 16], strides = [1, 1]} : vector<64x64xf32> to vector<64x16xf32>
    %cst_30 = arith.constant 2.500000e-01 : f32
    %100 = vector.broadcast %cst_30 : f32 to vector<64x16xf32>
    %101 = arith.mulf %99, %100 : vector<64x16xf32>
    %102 = arith.truncf %101 : vector<64x16xf32> to vector<64x16xbf16>
    %103 = vector.extract_strided_slice %34 {offsets = [0, 48], sizes = [64, 16], strides = [1, 1]} : vector<64x64xf32> to vector<64x16xf32>
    %104 = arith.truncf %103 : vector<64x16xf32> to vector<64x16xbf16>
    %105 = vector.extract_strided_slice %35 {offsets = [0, 48], sizes = [64, 16], strides = [1, 1]} : vector<64x64xf32> to vector<64x16xf32>
    %106 = arith.truncf %105 : vector<64x16xf32> to vector<64x16xbf16>
    "tpu.trace_start"() <{level = 10 : i32, message = "qd,kd->qk"}> : () -> ()
    %cst_31 = arith.constant dense<0.000000e+00> : vector<64x64xf32>
    %107 = tpu.matmul %102, %104, %cst_31 {dimension_numbers = #tpu.dot_dimension_numbers<[1], [1], [0], [0], [0, 0, 1, 0], [], []>} : vector<64x16xbf16>, vector<64x16xbf16>, vector<64x64xf32> -> vector<64x64xf32>
    "tpu.trace_stop"() : () -> ()
    %cst_32 = arith.constant dense<0xFF800000> : vector<64xf32>
    %108 = vector.multi_reduction <maximumf>, %107, %cst_32 [1] : vector<64x64xf32> to vector<64xf32>
    %109 = vector.shape_cast %108 : vector<64xf32> to vector<64x1xf32>
    %110 = vector.broadcast %109 : vector<64x1xf32> to vector<64x64xf32>
    %111 = arith.subf %107, %110 : vector<64x64xf32>
    %112 = math.exp %111 : vector<64x64xf32>
    %cst_33 = arith.constant dense<0.000000e+00> : vector<64xf32>
    %113 = vector.multi_reduction <add>, %112, %cst_33 [1] : vector<64x64xf32> to vector<64xf32>
    %114 = vector.shape_cast %113 : vector<64xf32> to vector<64x1xf32>
    %115 = tpu.reciprocal %114 {approx = true} : vector<64x1xf32> -> vector<64x1xf32>
    %116 = vector.broadcast %115 : vector<64x1xf32> to vector<64x64xf32>
    %117 = arith.mulf %112, %116 : vector<64x64xf32>
    %118 = arith.truncf %117 : vector<64x64xf32> to vector<64x64xbf16>
    %cst_34 = arith.constant dense<0.000000e+00> : vector<64x16xf32>
    %119 = tpu.matmul %118, %106, %cst_34 {dimension_numbers = #tpu.dot_dimension_numbers<[1], [0], [0], [1], [0, 0, 1, 1], [], []>} : vector<64x64xbf16>, vector<64x16xbf16>, vector<64x16xf32> -> vector<64x16xf32>
    %120 = tpu.concatenate %56, %77, %98, %119 in 1 : vector<64x16xf32>, vector<64x16xf32>, vector<64x16xf32>, vector<64x16xf32> -> vector<64x64xf32>
    %cst_35 = arith.constant dense<0.000000e+00> : vector<64xf32>
    %121 = vector.multi_reduction <add>, %120, %cst_35 [1] : vector<64x64xf32> to vector<64xf32>
    %122 = vector.shape_cast %121 : vector<64xf32> to vector<64x1xf32>
    %cst_36 = arith.constant 6.400000e+01 : f32
    %123 = vector.broadcast %cst_36 : f32 to vector<64x1xf32>
    %124 = arith.divf %122, %123 : vector<64x1xf32>
    %125 = vector.broadcast %124 : vector<64x1xf32> to vector<64x64xf32>
    %126 = arith.subf %120, %125 : vector<64x64xf32>
    %127 = arith.mulf %126, %126 : vector<64x64xf32>
    %cst_37 = arith.constant dense<0.000000e+00> : vector<64xf32>
    %128 = vector.multi_reduction <add>, %127, %cst_37 [1] : vector<64x64xf32> to vector<64xf32>
    %129 = vector.shape_cast %128 : vector<64xf32> to vector<64x1xf32>
    %cst_38 = arith.constant 6.400000e+01 : f32
    %130 = vector.broadcast %cst_38 : f32 to vector<64x1xf32>
    %131 = arith.divf %129, %130 : vector<64x1xf32>
    %132 = vector.broadcast %124 : vector<64x1xf32> to vector<64x64xf32>
    %133 = arith.subf %120, %132 : vector<64x64xf32>
    %cst_39 = arith.constant 9.99999974E-6 : f32
    %134 = vector.broadcast %cst_39 : f32 to vector<64x1xf32>
    %135 = arith.addf %131, %134 : vector<64x1xf32>
    %136 = math.rsqrt %135 : vector<64x1xf32>
    %137 = vector.broadcast %136 : vector<64x1xf32> to vector<64x64xf32>
    %138 = arith.mulf %133, %137 : vector<64x64xf32>
    %c0_40 = arith.constant 0 : index
    %c0_41 = arith.constant 0 : index
    %139 = vector.load %arg6[%c0_40, %c0_41] : memref<1x64xf32, #tpu.memory_space<vmem>>, vector<1x64xf32>
    %140 = vector.broadcast %139 : vector<1x64xf32> to vector<64x64xf32>
    %141 = arith.mulf %138, %140 : vector<64x64xf32>
    %c0_42 = arith.constant 0 : index
    %c0_43 = arith.constant 0 : index
    %142 = vector.load %arg7[%c0_42, %c0_43] : memref<1x64xf32, #tpu.memory_space<vmem>>, vector<1x64xf32>
    %143 = vector.broadcast %142 : vector<1x64xf32> to vector<64x64xf32>
    %144 = arith.addf %141, %143 : vector<64x64xf32>
    %145 = arith.truncf %144 : vector<64x64xf32> to vector<64x64xbf16>
    %c0_44 = arith.constant 0 : index
    %c0_45 = arith.constant 0 : index
    %146 = vector.load %arg8[%c0_44, %c0_45] : memref<64x64xbf16, #tpu.memory_space<vmem>>, vector<64x64xbf16>
    %cst_46 = arith.constant dense<0.000000e+00> : vector<64x64xf32>
    %147 = tpu.matmul %145, %146, %cst_46 {dimension_numbers = #tpu.dot_dimension_numbers<[1], [0], [0], [1], [0, 0, 1, 1], [], []>} : vector<64x64xbf16>, vector<64x64xbf16>, vector<64x64xf32> -> vector<64x64xf32>
    %c0_47 = arith.constant 0 : index
    %c0_48 = arith.constant 0 : index
    %148 = vector.load %arg9[%c0_47, %c0_48] : memref<1x64xf32, #tpu.memory_space<vmem>>, vector<1x64xf32>
    %149 = vector.broadcast %148 : vector<1x64xf32> to vector<64x64xf32>
    %150 = arith.addf %147, %149 : vector<64x64xf32>
    %151 = arith.addf %150, %2 : vector<64x64xf32>
    %152 = tpu.transpose %151, [1, 0] : vector<64x64xf32> -> vector<64x64xf32>
    %c0_49 = arith.constant 0 : index
    %c0_50 = arith.constant 0 : index
    %c0_51 = arith.constant 0 : index
    %153 = vector.load %arg10[%c0_49, %c0_50, %c0_51] : memref<1x64x64xf32, #tpu.memory_space<vmem>>, vector<1x64x64xf32>
    %154 = vector.shape_cast %153 : vector<1x64x64xf32> to vector<64x64xf32>
    %155 = vector.shape_cast %152 : vector<64x64xf32> to vector<1x64x64xf32>
    tpu.vector_store %arg10[%c0_49, %c0_50, %c0_51], %155 {strides = array<i32>} : memref<1x64x64xf32, #tpu.memory_space<vmem>>, vector<1x64x64xf32>,
    return
  }
  func.func @transform_0(%arg0: i32) -> (i32, i32, i32) {
    %c0_i32 = arith.constant 0 : i32
    %c0_i32_0 = arith.constant 0 : i32
    %c0_i32_1 = arith.constant 0 : i32
    return %arg0, %c0_i32, %c0_i32_0 : i32, i32, i32
  }
  func.func @transform_1(%arg0: i32) -> (i32, i32) {
    %c0_i32 = arith.constant 0 : i32
    %c0_i32_0 = arith.constant 0 : i32
    %c0_i32_1 = arith.constant 0 : i32
    return %c0_i32, %c0_i32_0 : i32, i32
  }
  func.func @transform_2(%arg0: i32) -> (i32, i32) {
    %c0_i32 = arith.constant 0 : i32
    %c0_i32_0 = arith.constant 0 : i32
    %c0_i32_1 = arith.constant 0 : i32
    return %c0_i32, %c0_i32_0 : i32, i32
  }
  func.func @transform_3(%arg0: i32) -> (i32, i32) {
    %c0_i32 = arith.constant 0 : i32
    %c0_i32_0 = arith.constant 0 : i32
    %c0_i32_1 = arith.constant 0 : i32
    return %c0_i32, %c0_i32_0 : i32, i32
  }
  func.func @transform_4(%arg0: i32) -> (i32, i32) {
    %c0_i32 = arith.constant 0 : i32
    %c0_i32_0 = arith.constant 0 : i32
    %c0_i32_1 = arith.constant 0 : i32
    return %c0_i32, %c0_i32_0 : i32, i32
  }
  func.func @transform_5(%arg0: i32) -> (i32, i32) {
    %c0_i32 = arith.constant 0 : i32
    %c0_i32_0 = arith.constant 0 : i32
    %c0_i32_1 = arith.constant 0 : i32
    return %c0_i32, %c0_i32_0 : i32, i32
  }
  func.func @transform_6(%arg0: i32) -> (i32, i32) {
    %c0_i32 = arith.constant 0 : i32
    %c0_i32_0 = arith.constant 0 : i32
    %c0_i32_1 = arith.constant 0 : i32
    return %c0_i32, %c0_i32_0 : i32, i32
  }
  func.func @transform_7(%arg0: i32) -> (i32, i32) {
    %c0_i32 = arith.constant 0 : i32
    %c0_i32_0 = arith.constant 0 : i32
    %c0_i32_1 = arith.constant 0 : i32
    return %c0_i32, %c0_i32_0 : i32, i32
  }
  func.func @transform_8(%arg0: i32) -> (i32, i32) {
    %c0_i32 = arith.constant 0 : i32
    %c0_i32_0 = arith.constant 0 : i32
    %c0_i32_1 = arith.constant 0 : i32
    return %c0_i32, %c0_i32_0 : i32, i32
  }
  func.func @transform_9(%arg0: i32) -> (i32, i32, i32) {
    %c0_i32 = arith.constant 0 : i32
    %c0_i32_0 = arith.constant 0 : i32
    %c0_i32_1 = arith.constant 0 : i32
    return %arg0, %c0_i32, %c0_i32_0 : i32, i32, i32
  }
}

</mosaic_0001>

<llo_original>
// kernel: frequency_time_attention.1
$region0: #{frequency_time_attention.1}
  #allocation0 [shape = 'u32[]', space=smem, size = 0x4, offset = 0x4, fixed_abs, tag = 'smem constant byte address 0x4 - core index']
  #allocation1 [shape = 'u32[144,128]{1,0:T(1,128)}', space=vmem, size = 0x12000, scoped, tag = 'internal scratch']
  %s0 = inlined_call_operand.vmem [shape: f32[2,64,64], index: 0, kind: input, shape index: {}]
  %s1 = inlined_call_operand.vmem [shape: f32[1,64], index: 1, kind: input, shape index: {}]
  %s2 = inlined_call_operand.vmem [shape: f32[1,64], index: 2, kind: input, shape index: {}]
  %s3 = inlined_call_operand.vmem [shape: bf16[64,192], index: 3, kind: input, shape index: {}]
  %s4 = inlined_call_operand.vmem [shape: f32[1,192], index: 4, kind: input, shape index: {}]
  %s5 = inlined_call_operand.vmem [shape: f32[1,64], index: 5, kind: input, shape index: {}]
  %s6 = inlined_call_operand.vmem [shape: f32[1,64], index: 6, kind: input, shape index: {}]
  %s7 = inlined_call_operand.vmem [shape: bf16[64,64], index: 7, kind: input, shape index: {}]
  %s8 = inlined_call_operand.vmem [shape: f32[1,64], index: 8, kind: input, shape index: {}]
  %s9 = inlined_call_operand.vmem [shape: f32[2,64,64], index: 9, kind: output, shape index: {}]
  %s10 = sld [smem:[#allocation0]]
  $region69: #{frequency_time_attention.1} parent=0
    _
  %s12 = ssub.s32 1, %s10
  %s13 = scalar_select 0, %s12, %s10
  loop: start=0, step=1, limit=4
  $region2: #{frequency_time_attention.1} parent=0 // loop_pre_header
    _
  $region3: #{frequency_time_attention.1} parent=0 // loop_header
    %s15 = sphi 0, %s19
    %p16 = scmp.ge.s32.totalorder %s15, 4
    %s25 = sphi 0, %s27
    %s28 = sphi 0, %s25
    %s29 = sphi 0, %s28
    %s45 = sphi 0, %s29
    %s49 = sphi 0, %s49
    %s51 = sphi 0, %s49
    %s52 = sphi 0, %s51
    %s66 = sphi 0, %s52
    %s70 = sphi 0, %s70
    %s72 = sphi 0, %s70
    %s73 = sphi 0, %s72
    %s87 = sphi 0, %s73
    %s91 = sphi 0, %s91
    %s93 = sphi 0, %s91
    %s94 = sphi 0, %s93
    %s108 = sphi 0, %s94
    %s112 = sphi 0, %s112
    %s114 = sphi 0, %s112
    %s115 = sphi 0, %s114
    %s129 = sphi 0, %s115
    %s133 = sphi 0, %s133
    %s135 = sphi 0, %s133
    %s136 = sphi 0, %s135
    %s150 = sphi 0, %s136
    %s154 = sphi 0, %s154
    %s156 = sphi 0, %s154
    %s157 = sphi 0, %s156
    %s171 = sphi 0, %s157
    %s175 = sphi 0, %s175
    %s177 = sphi 0, %s175
    %s178 = sphi 0, %s177
    %s192 = sphi 0, %s178
    %s196 = sphi 0, %s196
    %s198 = sphi 0, %s196
    %s199 = sphi 0, %s198
    %s213 = sphi 0, %s199
    %s219 = sphi 0, %s221
    %s222 = sphi 0, %s219
    %s223 = sphi 0, %s222
    %s239 = sphi 0, %s223
  $region4: #{frequency_time_attention.1} parent=0 // loop_header_branch
    %18 = sbr.rel (%p16) target = $region8
  $region5: #{frequency_time_attention.1} parent=0 // loop_body
    %s20 = ssub.s32 %s15, 1
    %s21 = ssub.s32 %s15, 2
    %s22 = sadd.s32 %s15, 1
    %s23 = ssub.s32 %s15, %s22
    %p24 = scmp.eq.s32.totalorder %s23, 0
    %s26 = sadd.s32 %s25, 1
    %s27 = scalar_select %p24, %s25, %s26
    %p30 = pneg %p24
    %p31 = scmp.eq.s32.totalorder %s15, 1
    %p32 = por %p30, %p31
    %p33 = scmp.ne.s32.totalorder %s25, %s28
    %p34 = scmp.eq.s32.totalorder %s15, 0
    %p35 = por %p33, %p34
    %p36 = scmp.ne.s32.totalorder %s25, %s28
    %p37 = scmp.eq.s32.totalorder %s20, 1
    %p38 = por %p36, %p37
    %p39 = scmp.ne.s32.totalorder %s28, %s29
    %p40 = scmp.eq.s32.totalorder %s20, 0
    %p41 = por %p39, %p40
    %p42 = scmp.ne.s32.totalorder %s28, %s29
    %p43 = scmp.eq.s32.totalorder %s21, 1
    %p44 = por %p42, %p43
    %p46 = scmp.ne.s32.totalorder %s29, %s45
    %p47 = scmp.eq.s32.totalorder %s21, 0
    %p48 = por %p46, %p47
    %s50 = sadd.s32 %s49, 1
    %p53 = scmp.eq.s32.totalorder %s15, 1
    %p54 = scmp.ne.s32.totalorder %s49, %s51
    %p55 = scmp.eq.s32.totalorder %s15, 0
    %p56 = por %p54, %p55
    %p57 = scmp.ne.s32.totalorder %s49, %s51
    %p58 = scmp.eq.s32.totalorder %s20, 1
    %p59 = por %p57, %p58
    %p60 = scmp.ne.s32.totalorder %s51, %s52
    %p61 = scmp.eq.s32.totalorder %s20, 0
    %p62 = por %p60, %p61
    %p63 = scmp.ne.s32.totalorder %s51, %s52
    %p64 = scmp.eq.s32.totalorder %s21, 1
    %p65 = por %p63, %p64
    %p67 = scmp.ne.s32.totalorder %s52, %s66
    %p68 = scmp.eq.s32.totalorder %s21, 0
    %p69 = por %p67, %p68
    %s71 = sadd.s32 %s70, 1
    %p74 = scmp.eq.s32.totalorder %s15, 1
    %p75 = scmp.ne.s32.totalorder %s70, %s72
    %p76 = scmp.eq.s32.totalorder %s15, 0
    %p77 = por %p75, %p76
    %p78 = scmp.ne.s32.totalorder %s70, %s72
    %p79 = scmp.eq.s32.totalorder %s20, 1
    %p80 = por %p78, %p79
    %p81 = scmp.ne.s32.totalorder %s72, %s73
    %p82 = scmp.eq.s32.totalorder %s20, 0
    %p83 = por %p81, %p82
    %p84 = scmp.ne.s32.totalorder %s72, %s73
    %p85 = scmp.eq.s32.totalorder %s21, 1
    %p86 = por %p84, %p85
    %p88 = scmp.ne.s32.totalorder %s73, %s87
    %p89 = scmp.eq.s32.totalorder %s21, 0
    %p90 = por %p88, %p89
    %s92 = sadd.s32 %s91, 1
    %p95 = scmp.eq.s32.totalorder %s15, 1
    %p96 = scmp.ne.s32.totalorder %s91, %s93
    %p97 = scmp.eq.s32.totalorder %s15, 0
    %p98 = por %p96, %p97
    %p99 = scmp.ne.s32.totalorder %s91, %s93
    %p100 = scmp.eq.s32.totalorder %s20, 1
    %p101 = por %p99, %p100
    %p102 = scmp.ne.s32.totalorder %s93, %s94
    %p103 = scmp.eq.s32.totalorder %s20, 0
    %p104 = por %p102, %p103
    %p105 = scmp.ne.s32.totalorder %s93, %s94
    %p106 = scmp.eq.s32.totalorder %s21, 1
    %p107 = por %p105, %p106
    %p109 = scmp.ne.s32.totalorder %s94, %s108
    %p110 = scmp.eq.s32.totalorder %s21, 0
    %p111 = por %p109, %p110
    %s113 = sadd.s32 %s112, 1
    %p116 = scmp.eq.s32.totalorder %s15, 1
    %p117 = scmp.ne.s32.totalorder %s112, %s114
    %p118 = scmp.eq.s32.totalorder %s15, 0
    %p119 = por %p117, %p118
    %p120 = scmp.ne.s32.totalorder %s112, %s114
    %p121 = scmp.eq.s32.totalorder %s20, 1
    %p122 = por %p120, %p121
    %p123 = scmp.ne.s32.totalorder %s114, %s115
    %p124 = scmp.eq.s32.totalorder %s20, 0
    %p125 = por %p123, %p124
    %p126 = scmp.ne.s32.totalorder %s114, %s115
    %p127 = scmp.eq.s32.totalorder %s21, 1
    %p128 = por %p126, %p127
    %p130 = scmp.ne.s32.totalorder %s115, %s129
    %p131 = scmp.eq.s32.totalorder %s21, 0
    %p132 = por %p130, %p131
    %s134 = sadd.s32 %s133, 1
    %p137 = scmp.eq.s32.totalorder %s15, 1
    %p138 = scmp.ne.s32.totalorder %s133, %s135
    %p139 = scmp.eq.s32.totalorder %s15, 0
    %p140 = por %p138, %p139
    %p141 = scmp.ne.s32.totalorder %s133, %s135
    %p142 = scmp.eq.s32.totalorder %s20, 1
    %p143 = por %p141, %p142
    %p144 = scmp.ne.s32.totalorder %s135, %s136
    %p145 = scmp.eq.s32.totalorder %s20, 0
    %p146 = por %p144, %p145
    %p147 = scmp.ne.s32.totalorder %s135, %s136
    %p148 = scmp.eq.s32.totalorder %s21, 1
    %p149 = por %p147, %p148
    %p151 = scmp.ne.s32.totalorder %s136, %s150
    %p152 = scmp.eq.s32.totalorder %s21, 0
    %p153 = por %p151, %p152
    %s155 = sadd.s32 %s154, 1
    %p158 = scmp.eq.s32.totalorder %s15, 1
    %p159 = scmp.ne.s32.totalorder %s154, %s156
    %p160 = scmp.eq.s32.totalorder %s15, 0
    %p161 = por %p159, %p160
    %p162 = scmp.ne.s32.totalorder %s154, %s156
    %p163 = scmp.eq.s32.totalorder %s20, 1
    %p164 = por %p162, %p163
    %p165 = scmp.ne.s32.totalorder %s156, %s157
    %p166 = scmp.eq.s32.totalorder %s20, 0
    %p167 = por %p165, %p166
    %p168 = scmp.ne.s32.totalorder %s156, %s157
    %p169 = scmp.eq.s32.totalorder %s21, 1
    %p170 = por %p168, %p169
    %p172 = scmp.ne.s32.totalorder %s157, %s171
    %p173 = scmp.eq.s32.totalorder %s21, 0
    %p174 = por %p172, %p173
    %s176 = sadd.s32 %s175, 1
    %p179 = scmp.eq.s32.totalorder %s15, 1
    %p180 = scmp.ne.s32.totalorder %s175, %s177
    %p181 = scmp.eq.s32.totalorder %s15, 0
    %p182 = por %p180, %p181
    %p183 = scmp.ne.s32.totalorder %s175, %s177
    %p184 = scmp.eq.s32.totalorder %s20, 1
    %p185 = por %p183, %p184
    %p186 = scmp.ne.s32.totalorder %s177, %s178
    %p187 = scmp.eq.s32.totalorder %s20, 0
    %p188 = por %p186, %p187
    %p189 = scmp.ne.s32.totalorder %s177, %s178
    %p190 = scmp.eq.s32.totalorder %s21, 1
    %p191 = por %p189, %p190
    %p193 = scmp.ne.s32.totalorder %s178, %s192
    %p194 = scmp.eq.s32.totalorder %s21, 0
    %p195 = por %p193, %p194
    %s197 = sadd.s32 %s196, 1
    %p200 = scmp.eq.s32.totalorder %s15, 1
    %p201 = scmp.ne.s32.totalorder %s196, %s198
    %p202 = scmp.eq.s32.totalorder %s15, 0
    %p203 = por %p201, %p202
    %p204 = scmp.ne.s32.totalorder %s196, %s198
    %p205 = scmp.eq.s32.totalorder %s20, 1
    %p206 = por %p204, %p205
    %p207 = scmp.ne.s32.totalorder %s198, %s199
    %p208 = scmp.eq.s32.totalorder %s20, 0
    %p209 = por %p207, %p208
    %p210 = scmp.ne.s32.totalorder %s198, %s199
    %p211 = scmp.eq.s32.totalorder %s21, 1
    %p212 = por %p210, %p211
    %p214 = scmp.ne.s32.totalorder %s199, %s213
    %p215 = scmp.eq.s32.totalorder %s21, 0
    %p216 = por %p214, %p215
    %s217 = ssub.s32 %s15, %s22
    %p218 = scmp.eq.s32.totalorder %s217, 0
    %s220 = sadd.s32 %s219, 1
    %s221 = scalar_select %p218, %s219, %s220
    %p224 = pneg %p218
    %p225 = scmp.eq.s32.totalorder %s15, 1
    %p226 = por %p224, %p225
    %p227 = scmp.ne.s32.totalorder %s219, %s222
    %p228 = scmp.eq.s32.totalorder %s15, 0
    %p229 = por %p227, %p228
    %p230 = scmp.ne.s32.totalorder %s219, %s222
    %p231 = scmp.eq.s32.totalorder %s20, 1
    %p232 = por %p230, %p231
    %p233 = scmp.ne.s32.totalorder %s222, %s223
    %p234 = scmp.eq.s32.totalorder %s20, 0
    %p235 = por %p233, %p234
    %p236 = scmp.ne.s32.totalorder %s222, %s223
    %p237 = scmp.eq.s32.totalorder %s21, 1
    %p238 = por %p236, %p237
    %p240 = scmp.ne.s32.totalorder %s223, %s239
    %p241 = scmp.eq.s32.totalorder %s21, 0
    %p242 = por %p240, %p241
    %p243 = scmp.le.s32.totalorder 1, %s15
    %p244 = scmp.lt.s32.totalorder %s15, 3
    %p245 = pnand %p243, %p244
    %p246 = pneg %p245
    // Predicated region
    $region9: #{frequency_time_attention.1} parent=5 // pred_check
      _
    $region10: #{frequency_time_attention.1} parent=5 // pred_check_branch
      %248 = sbr.rel (%p245) target = $region12
    $region11: #{frequency_time_attention.1} parent=5 // pred_region
      %s249 = ssub.s32 %s15, 1
      // Predicated region
      $region13: #{frequency_time_attention.1} parent=11 // pred_check
        %p250 = pneg %p62
      $region14: #{frequency_time_attention.1} parent=11 // pred_check_branch
        %252 = sbr.rel (%p250) target = $region16
      $region15: #{frequency_time_attention.1} parent=11 // pred_region
        _
      $region16: #{frequency_time_attention.1} parent=11 // pred_fallthru
        _
      // Predicated region
      $region17: #{frequency_time_attention.1} parent=11 // pred_check
        %p253 = pneg %p83
      $region18: #{frequency_time_attention.1} parent=11 // pred_check_branch
        %255 = sbr.rel (%p253) target = $region20
      $region19: #{frequency_time_attention.1} parent=11 // pred_region
        _
      $region20: #{frequency_time_attention.1} parent=11 // pred_fallthru
        _
      // Predicated region
      $region21: #{frequency_time_attention.1} parent=11 // pred_check
        %p256 = pneg %p104
      $region22: #{frequency_time_attention.1} parent=11 // pred_check_branch
        %258 = sbr.rel (%p256) target = $region24
      $region23: #{frequency_time_attention.1} parent=11 // pred_region
        _
      $region24: #{frequency_time_attention.1} parent=11 // pred_fallthru
        _
      // Predicated region
      $region25: #{frequency_time_attention.1} parent=11 // pred_check
        %p259 = pneg %p125
      $region26: #{frequency_time_attention.1} parent=11 // pred_check_branch
        %261 = sbr.rel (%p259) target = $region28
      $region27: #{frequency_time_attention.1} parent=11 // pred_region
        _
      $region28: #{frequency_time_attention.1} parent=11 // pred_fallthru
        _
      // Predicated region
      $region29: #{frequency_time_attention.1} parent=11 // pred_check
        %p262 = pneg %p146
      $region30: #{frequency_time_attention.1} parent=11 // pred_check_branch
        %264 = sbr.rel (%p262) target = $region32
      $region31: #{frequency_time_attention.1} parent=11 // pred_region
        _
      $region32: #{frequency_time_attention.1} parent=11 // pred_fallthru
        _
      // Predicated region
      $region33: #{frequency_time_attention.1} parent=11 // pred_check
        %p265 = pneg %p167
      $region34: #{frequency_time_attention.1} parent=11 // pred_check_branch
        %267 = sbr.rel (%p265) target = $region36
      $region35: #{frequency_time_attention.1} parent=11 // pred_region
        _
      $region36: #{frequency_time_attention.1} parent=11 // pred_fallthru
        _
      // Predicated region
      $region37: #{frequency_time_attention.1} parent=11 // pred_check
        %p268 = pneg %p188
      $region38: #{frequency_time_attention.1} parent=11 // pred_check_branch
        %270 = sbr.rel (%p268) target = $region40
      $region39: #{frequency_time_attention.1} parent=11 // pred_region
        _
      $region40: #{frequency_time_attention.1} parent=11 // pred_fallthru
        _
      // Predicated region
      $region41: #{frequency_time_attention.1} parent=11 // pred_check
        %p271 = pneg %p209
      $region42: #{frequency_time_attention.1} parent=11 // pred_check_branch
        %273 = sbr.rel (%p271) target = $region44
      $region43: #{frequency_time_attention.1} parent=11 // pred_region
        _
      $region44: #{frequency_time_attention.1} parent=11 // pred_fallthru
        _
    $region12: #{frequency_time_attention.1} parent=5 // pred_fallthru
      _
    %p274 = scmp.lt.s32.totalorder %s15, 2
    // Predicated region
    $region45: #{frequency_time_attention.1} parent=5 // pred_check
      %p275 = pneg %p274
    $region46: #{frequency_time_attention.1} parent=5 // pred_check_branch
      %277 = sbr.rel (%p275) target = $region48
    $region47: #{frequency_time_attention.1} parent=5 // pred_region
      // Predicated region
      $region49: #{frequency_time_attention.1} parent=47 // pred_check
        %p278 = pneg %p35
      $region50: #{frequency_time_attention.1} parent=47 // pred_check_branch
        %280 = sbr.rel (%p278) target = $region52
      $region51: #{frequency_time_attention.1} parent=47 // pred_region
        %p281 = scmp.lt.s32.totalorder %s15, 1
        %s282 = scalar_select %p281, %s15, 1
        %s283 = smul.addr %s282, 8
        %s284 = smul.addr %s283, 8
        %s285 = scalar_lea.vmem %s0, %s284
      $region52: #{frequency_time_attention.1} parent=47 // pred_fallthru
        _
    $region48: #{frequency_time_attention.1} parent=5 // pred_fallthru
      _
    %p286 = scmp.le.s32.totalorder 1, %s15
    %p287 = scmp.lt.s32.totalorder %s15, 3
    %p288 = pnand %p286, %p287
    %p289 = pneg %p288
    // Predicated region
    $region53: #{frequency_time_attention.1} parent=5 // pred_check
      _
    $region54: #{frequency_time_attention.1} parent=5 // pred_check_branch
      %291 = sbr.rel (%p288) target = $region56
    $region55: #{frequency_time_attention.1} parent=5 // pred_region
      %s292 = ssub.s32 %s15, 1
      %p293 = scmp.lt.s32.totalorder %s20, 1
      %s294 = scalar_select %p293, %s20, 1
      %s295 = smul.addr %s294, 8
      %s296 = smul.addr %s295, 8
      %s297 = scalar_lea.vmem %s0, %s296
      %p298 = pneg %p41
      %p299 = pneg %p38
      %p300 = pneg %p62
      %p301 = pneg %p59
      %p302 = pneg %p83
      %p303 = pneg %p80
      %p304 = pneg %p104
      %p305 = pneg %p101
      %p306 = pneg %p125
      %p307 = pneg %p122
      %p308 = pneg %p146
      %p309 = pneg %p143
      %p310 = pneg %p167
      %p311 = pneg %p164
      %p312 = pneg %p188
      %p313 = pneg %p185
      %p314 = pneg %p209
      %p315 = pneg %p206
      %p316 = pneg %p235
      %p317 = pneg %p232
      %p318 = scmp.lt.s32.totalorder %s20, 1
      %s319 = scalar_select %p318, %s20, 1
      %s320 = smul.addr %s319, 8
      %s321 = smul.addr %s320, 8
      %s322 = scalar_lea.vmem %s9, %s321
      %p323 = scmp.lt.s32.totalorder %s20, 1
      %s324 = scalar_select %p323, %s20, 1
      %s325 = smul.addr %s324, 8
      %s326 = smul.addr %s325, 8
      %s327 = scalar_lea.vmem %s0, %s326
      %p328 = scmp.lt.s32.totalorder %s20, 1
      %s329 = scalar_select %p328, %s20, 1
      %s330 = smul.addr %s329, 8
      %s331 = smul.addr %s330, 8
      %s332 = scalar_lea.vmem %s9, %s331
      %v334 = vld [vmem:[%s327] sm:$0xff]
      %v335 = vld [vmem:[%s327 + $0x8] sm:$0xff]
      %v336 = vld [vmem:[%s327 + $0x10] sm:$0xff]
      %v337 = vld [vmem:[%s327 + $0x18] sm:$0xff]
      %v338 = vld [vmem:[%s327 + $0x20] sm:$0xff]
      %v339 = vld [vmem:[%s327 + $0x28] sm:$0xff]
      %v340 = vld [vmem:[%s327 + $0x30] sm:$0xff]
      %v341 = vld [vmem:[%s327 + $0x38] sm:$0xff]
      %342 = vxpose.xlu0.b32.start [1/16] %v334, 128
      %343 = vxpose.xlu0.b32.cont [2/16] %v335, 128
      %344 = vxpose.xlu0.b32.cont [3/16] %v336, 128
      %345 = vxpose.xlu0.b32.cont [4/16] %v337, 128
      %346 = vxpose.xlu0.b32.cont [5/16] %v338, 128
      %347 = vxpose.xlu0.b32.cont [6/16] %v339, 128
      %348 = vxpose.xlu0.b32.cont [7/16] %v340, 128
      %349 = vxpose.xlu0.b32.cont [8/16] %v341, 128
      %350 = vxpose.xlu0.b32.cont [9/16] 0.0, 128
      %351 = vxpose.xlu0.b32.cont [10/16] 0.0, 128
      %352 = vxpose.xlu0.b32.cont [11/16] 0.0, 128
      %353 = vxpose.xlu0.b32.cont [12/16] 0.0, 128
      %354 = vxpose.xlu0.b32.cont [13/16] 0.0, 128
      %355 = vxpose.xlu0.b32.cont [14/16] 0.0, 128
      %356 = vxpose.xlu0.b32.cont [15/16] 0.0, 128
      %357 = vxpose.xlu0.b32.end [16/16] 0.0, 128
      %v358 = vpop.trf.xlu0
      %v359 = vpop.trf.xlu0
      %v360 = vpop.trf.xlu0
      %v361 = vpop.trf.xlu0
      %v362 = vpop.trf.xlu0
      %v363 = vpop.trf.xlu0
      %v364 = vpop.trf.xlu0
      %v365 = vpop.trf.xlu0
      %v366 = vpop.trf.xlu0
      %v367 = vpop.trf.xlu0
      %v368 = vpop.trf.xlu0
      %v369 = vpop.trf.xlu0
      %v370 = vpop.trf.xlu0
      %v371 = vpop.trf.xlu0
      %v372 = vpop.trf.xlu0
      %v373 = vpop.trf.xlu0
      %vm374 = vcmask 523264
      %v375 = vsel %vm374, %v358, 0.0
      %376 = vadd.xlane.f32.xlu0 %v375
      %v377 = vpop.xlane.xlu0 %376
      %v378 = vsel %vm374, %v359, 0.0
      %379 = vadd.xlane.f32.xlu0 %v378
      %v380 = vpop.xlane.xlu0 %379
      %v381 = vsel %vm374, %v360, 0.0
      %382 = vadd.xlane.f32.xlu0 %v381
      %v383 = vpop.xlane.xlu0 %382
      %v384 = vsel %vm374, %v361, 0.0
      %385 = vadd.xlane.f32.xlu0 %v384
      %v386 = vpop.xlane.xlu0 %385
      %v387 = vsel %vm374, %v362, 0.0
      %388 = vadd.xlane.f32.xlu0 %v387
      %v389 = vpop.xlane.xlu0 %388
      %v390 = vsel %vm374, %v363, 0.0
      %391 = vadd.xlane.f32.xlu0 %v390
      %v392 = vpop.xlane.xlu0 %391
      %v393 = vsel %vm374, %v364, 0.0
      %394 = vadd.xlane.f32.xlu0 %v393
      %v395 = vpop.xlane.xlu0 %394
      %v396 = vsel %vm374, %v365, 0.0
      %397 = vadd.xlane.f32.xlu0 %v396
      %v398 = vpop.xlane.xlu0 %397
      %v399 = vrcp.pop 64.0
      %v400 = vmul.f32 %v377, %v399
      %v401 = vmul.f32 %v380, %v399
      %v402 = vmul.f32 %v383, %v399
      %v403 = vmul.f32 %v386, %v399
      %v404 = vmul.f32 %v389, %v399
      %v405 = vmul.f32 %v392, %v399
      %v406 = vmul.f32 %v395, %v399
      %v407 = vmul.f32 %v398, %v399
      %v408 = vsub.f32 %v358, %v400
      %v409 = vsub.f32 %v359, %v401
      %v410 = vsub.f32 %v360, %v402
      %v411 = vsub.f32 %v361, %v403
      %v412 = vsub.f32 %v362, %v404
      %v413 = vsub.f32 %v363, %v405
      %v414 = vsub.f32 %v364, %v406
      %v415 = vsub.f32 %v365, %v407
      %v416 = vmul.f32 %v408, %v408
      %v417 = vmul.f32 %v409, %v409
      %v418 = vmul.f32 %v410, %v410
      %v419 = vmul.f32 %v411, %v411
      %v420 = vmul.f32 %v412, %v412
      %v421 = vmul.f32 %v413, %v413
      %v422 = vmul.f32 %v414, %v414
      %v423 = vmul.f32 %v415, %v415
      %v424 = vsel %vm374, %v416, 0.0
      %425 = vadd.xlane.f32.xlu0 %v424
      %v426 = vpop.xlane.xlu0 %425
      %v427 = vsel %vm374, %v417, 0.0
      %428 = vadd.xlane.f32.xlu0 %v427
      %v429 = vpop.xlane.xlu0 %428
      %v430 = vsel %vm374, %v418, 0.0
      %431 = vadd.xlane.f32.xlu0 %v430
      %v432 = vpop.xlane.xlu0 %431
      %v433 = vsel %vm374, %v419, 0.0
      %434 = vadd.xlane.f32.xlu0 %v433
      %v435 = vpop.xlane.xlu0 %434
      %v436 = vsel %vm374, %v420, 0.0
      %437 = vadd.xlane.f32.xlu0 %v436
      %v438 = vpop.xlane.xlu0 %437
      %v439 = vsel %vm374, %v421, 0.0
      %440 = vadd.xlane.f32.xlu0 %v439
      %v441 = vpop.xlane.xlu0 %440
      %v442 = vsel %vm374, %v422, 0.0
      %443 = vadd.xlane.f32.xlu0 %v442
      %v444 = vpop.xlane.xlu0 %443
      %v445 = vsel %vm374, %v423, 0.0
      %446 = vadd.xlane.f32.xlu0 %v445
      %v447 = vpop.xlane.xlu0 %446
      %v448 = vmul.f32 %v426, %v399
      %v449 = vmul.f32 %v429, %v399
      %v450 = vmul.f32 %v432, %v399
      %v451 = vmul.f32 %v435, %v399
      %v452 = vmul.f32 %v438, %v399
      %v453 = vmul.f32 %v441, %v399
      %v454 = vmul.f32 %v444, %v399
      %v455 = vmul.f32 %v447, %v399
      %v456 = vadd.f32 %v448, 1e-05
      %v457 = vadd.f32 %v449, 1e-05
      %v458 = vadd.f32 %v450, 1e-05
      %v459 = vadd.f32 %v451, 1e-05
      %v460 = vadd.f32 %v452, 1e-05
      %v461 = vadd.f32 %v453, 1e-05
      %v462 = vadd.f32 %v454, 1e-05
      %v463 = vadd.f32 %v455, 1e-05
      %v464 = vrsqrt.pop %v456
      %v465 = vrsqrt.pop %v457
      %v466 = vrsqrt.pop %v458
      %v467 = vrsqrt.pop %v459
      %v468 = vrsqrt.pop %v460
      %v469 = vrsqrt.pop %v461
      %v470 = vrsqrt.pop %v462
      %v471 = vrsqrt.pop %v463
      %v472 = vmul.f32 %v408, %v464
      %v473 = vmul.f32 %v409, %v465
      %v474 = vmul.f32 %v410, %v466
      %v475 = vmul.f32 %v411, %v467
      %v476 = vmul.f32 %v412, %v468
      %v477 = vmul.f32 %v413, %v469
      %v478 = vmul.f32 %v414, %v470
      %v479 = vmul.f32 %v415, %v471
      %v480 = vld [vmem:[%s1] sm:$0x1]
      %v482 = vlaneseq
      %v483 = vshrl.u32 %v482, 7
      %v484 = vsub.s32 0, %v483
      %v485 = vrot.slane %v480, %v484
      %v487 = vmul.f32 %v472, %v485
      %v488 = vmul.f32 %v473, %v485
      %v489 = vmul.f32 %v474, %v485
      %v490 = vmul.f32 %v475, %v485
      %v491 = vmul.f32 %v476, %v485
      %v492 = vmul.f32 %v477, %v485
      %v493 = vmul.f32 %v478, %v485
      %v494 = vmul.f32 %v479, %v485
      %v495 = vld [vmem:[%s2] sm:$0x1]
      %v497 = vlaneseq
      %v498 = vshrl.u32 %v497, 7
      %v499 = vsub.s32 0, %v498
      %v500 = vrot.slane %v495, %v499
      %v502 = vadd.f32 %v487, %v500
      %v503 = vadd.f32 %v488, %v500
      %v504 = vadd.f32 %v489, %v500
      %v505 = vadd.f32 %v490, %v500
      %v506 = vadd.f32 %v491, %v500
      %v507 = vadd.f32 %v492, %v500
      %v508 = vadd.f32 %v493, %v500
      %v509 = vadd.f32 %v494, %v500
      %v510 = vpack.c.bf16 %v503, %v502
      %v511 = vpack.c.bf16 %v505, %v504
      %v512 = vpack.c.bf16 %v507, %v506
      %v513 = vpack.c.bf16 %v509, %v508
      %v514 = vld [vmem:[%s3] sm:$0xff]
      %v515 = vld [vmem:[%s3 + $0x8] sm:$0xff]
      %v516 = vld [vmem:[%s3 + $0x10] sm:$0xff]
      %v517 = vld [vmem:[%s3 + $0x18] sm:$0xff]
      %v518 = vld [vmem:[%s3 + $0x20] sm:$0xff]
      %v519 = vld [vmem:[%s3 + $0x28] sm:$0xff]
      %v520 = vld [vmem:[%s3 + $0x30] sm:$0xff]
      %v521 = vld [vmem:[%s3 + $0x38] sm:$0xff]
      %v522 = vld [vmem:[%s4] sm:$0x3]
      %v524 = vlaneseq
      %v525 = vshrl.u32 %v524, 7
      %v526 = vsub.s32 0, %v525
      %v527 = vrot.slane %v522, %v526
      %v528 = vlaneseq
      %v529 = vshrl.u32 %v528, 7
      %v530 = vsub.s32 1, %v529
      %v531 = vrot.slane %v522, %v530
      %v542 = vunpack.c.l.b16 %v514
      %v543 = vunpack.c.h.b16 %v514
      %v544 = vunpack.c.l.b16 %v515
      %v545 = vunpack.c.h.b16 %v515
      %v546 = vunpack.c.l.b16 %v516
      %v547 = vunpack.c.h.b16 %v516
      %v548 = vunpack.c.l.b16 %v517
      %v549 = vunpack.c.h.b16 %v517
      %v550 = vunpack.c.l.b16 %v518
      %v551 = vunpack.c.h.b16 %v518
      %v552 = vunpack.c.l.b16 %v519
      %v553 = vunpack.c.h.b16 %v519
      %v554 = vunpack.c.l.b16 %v520
      %v555 = vunpack.c.h.b16 %v520
      %v556 = vunpack.c.l.b16 %v521
      %v557 = vunpack.c.h.b16 %v521
      %v558 = vpack.c.b16 %v544, %v542
      %v559 = vpack.c.b16 %v545, %v543
      %v560 = vpack.c.b16 %v548, %v546
      %v561 = vpack.c.b16 %v549, %v547
      %v562 = vpack.c.b16 %v552, %v550
      %v563 = vpack.c.b16 %v553, %v551
      %v564 = vpack.c.b16 %v556, %v554
      %v565 = vpack.c.b16 %v557, %v555
      %v575 = vsel %vm374, %v510, 0
      %v578 = vsel %vm374, %v511, 0
      %v581 = vsel %vm374, %v512, 0
      %v584 = vsel %vm374, %v513, 0
      %586 = vmatprep.subr.bf16.mxu0 0
      %587 = vmatpush1.bf16.msra.mxu0 0
      %588 = vmatprep.subr.bf16.mxu0 0
      %589 = vmatpush1.bf16.msra.mxu0 0
      %590 = vmatprep.subr.bf16.mxu0 0
      %591 = vmatpush1.bf16.msra.mxu0 0
      %592 = vmatprep.subr.bf16.mxu0 0
      %593 = vmatpush1.bf16.msra.mxu0 0
      %594 = vmatprep.subr.bf16.mxu0 %v565
      %595 = vmatpush1.bf16.msra.mxu0 %v564
      %596 = vmatprep.subr.bf16.mxu0 %v563
      %597 = vmatpush1.bf16.msra.mxu0 %v562
      %598 = vmatprep.subr.bf16.mxu0 %v561
      %599 = vmatpush1.bf16.msra.mxu0 %v560
      %600 = vmatprep.subr.bf16.mxu0 %v559
      %601 = vmatpush1.bf16.msra.mxu0 %v558
      %602 = vmatprep.subr.bf16.mxu0 0
      %603 = vmatpush2.bf16.msra.mxu0 0
      %604 = vmatprep.subr.bf16.mxu0 0
      %605 = vmatpush2.bf16.msra.mxu0 0
      %606 = vmatprep.subr.bf16.mxu0 0
      %607 = vmatpush2.bf16.msra.mxu0 0
      %608 = vmatprep.subr.bf16.mxu0 0
      %609 = vmatpush2.bf16.msra.mxu0 0
      %610 = vmatprep.subr.bf16.mxu0 0
      %611 = vmatpush2.bf16.msra.mxu0 0
      %612 = vmatprep.subr.bf16.mxu0 0
      %613 = vmatpush2.bf16.msra.mxu0 0
      %614 = vmatprep.subr.bf16.mxu0 0
      %615 = vmatpush2.bf16.msra.mxu0 0
      %616 = vmatprep.subr.bf16.mxu0 0
      %617 = vmatpush2.bf16.msra.mxu0 0
      %618 = vmatprep.mubr.bf16.mxu0 0
      %619 = vmatmul.mubr.bf16.gmra.mxu0 %v575
      %v620 = vpop.f32.mrf.mxu0
      %v621 = vadd.f32 %v527, %v620
      %v622 = vpop.f32.mrf.mxu0
      %v623 = vadd.f32 %v531, %v622
      %v624 = vpop.f32.mrf.mxu0
      %v625 = vadd.f32 %v527, %v624
      %v626 = vpop.f32.mrf.mxu0
      %v627 = vadd.f32 %v531, %v626
      %628 = vmatprep.mubr.bf16.mxu0 0
      %629 = vmatmul.mubr.bf16.gmra.mxu0 %v578
      %v630 = vpop.f32.mrf.mxu0
      %v631 = vadd.f32 %v527, %v630
      %v632 = vpop.f32.mrf.mxu0
      %v633 = vadd.f32 %v531, %v632
      %v634 = vpop.f32.mrf.mxu0
      %v635 = vadd.f32 %v527, %v634
      %v636 = vpop.f32.mrf.mxu0
      %v637 = vadd.f32 %v531, %v636
      %638 = vmatprep.mubr.bf16.mxu0 0
      %639 = vmatmul.mubr.bf16.gmra.mxu0 %v581
      %v640 = vpop.f32.mrf.mxu0
      %v641 = vadd.f32 %v527, %v640
      %v642 = vpop.f32.mrf.mxu0
      %v643 = vadd.f32 %v531, %v642
      %v644 = vpop.f32.mrf.mxu0
      %v645 = vadd.f32 %v527, %v644
      %v646 = vpop.f32.mrf.mxu0
      %v647 = vadd.f32 %v531, %v646
      %648 = vmatprep.mubr.bf16.mxu0 0
      %649 = vmatmul.mubr.bf16.gmra.mxu0 %v584
      %v650 = vpop.f32.mrf.mxu0
      %v651 = vadd.f32 %v527, %v650
      %v652 = vpop.f32.mrf.mxu0
      %v653 = vadd.f32 %v531, %v652
      %v654 = vpop.f32.mrf.mxu0
      %v655 = vadd.f32 %v527, %v654
      %v656 = vpop.f32.mrf.mxu0
      %v657 = vadd.f32 %v531, %v656
      %658 = vdwg.mxu0
      %v659 = vmul.f32 %v621, 0.25
      %v660 = vmul.f32 %v625, 0.25
      %v661 = vmul.f32 %v631, 0.25
      %v662 = vmul.f32 %v635, 0.25
      %v663 = vmul.f32 %v641, 0.25
      %v664 = vmul.f32 %v645, 0.25
      %v665 = vmul.f32 %v651, 0.25
      %v666 = vmul.f32 %v655, 0.25
      %v667 = vpack.c.bf16 %v660, %v659
      %v668 = vpack.c.bf16 %v662, %v661
      %v669 = vpack.c.bf16 %v664, %v663
      %v670 = vpack.c.bf16 %v666, %v665
      %v671 = vpack.c.bf16 %v625, %v621
      %v672 = vpack.c.bf16 %v635, %v631
      %v673 = vpack.c.bf16 %v645, %v641
      %v674 = vpack.c.bf16 %v655, %v651
      %v675 = vpack.c.bf16 %v627, %v623
      %v676 = vpack.c.bf16 %v637, %v633
      %v677 = vpack.c.bf16 %v647, %v643
      %v678 = vpack.c.bf16 %v657, %v653
      %683 = vrot.lane.b32.xlu0 %v671, 64
      %v684 = vpop.permute.xlu0 %683
      %685 = vrot.lane.b32.xlu0 %v672, 64
      %v686 = vpop.permute.xlu0 %685
      %687 = vrot.lane.b32.xlu0 %v673, 64
      %v688 = vpop.permute.xlu0 %687
      %689 = vrot.lane.b32.xlu0 %v674, 64
      %v690 = vpop.permute.xlu0 %689
      %vm691 = vcmask 130048
      %v693 = vsel %vm691, %v667, 0
      %v696 = vsel %vm691, %v668, 0
      %v699 = vsel %vm691, %v669, 0
      %v702 = vsel %vm691, %v670, 0
      %v705 = vsel %vm691, %v684, 0
      %v708 = vsel %vm691, %v686, 0
      %v711 = vsel %vm691, %v688, 0
      %v714 = vsel %vm691, %v690, 0
      %716 = vmatprep.subr.bf16.mxu0 0
      %717 = vmatpush1.bf16.xpose.msra.mxu0 0
      %718 = vmatprep.subr.bf16.mxu0 0
      %719 = vmatpush1.bf16.xpose.msra.mxu0 0
      %720 = vmatprep.subr.bf16.mxu0 0
      %721 = vmatpush1.bf16.xpose.msra.mxu0 0
      %722 = vmatprep.subr.bf16.mxu0 0
      %723 = vmatpush1.bf16.xpose.msra.mxu0 0
      %724 = vmatprep.subr.bf16.mxu0 0
      %725 = vmatpush1.bf16.xpose.msra.mxu0 %v714
      %726 = vmatprep.subr.bf16.mxu0 0
      %727 = vmatpush1.bf16.xpose.msra.mxu0 %v711
      %728 = vmatprep.subr.bf16.mxu0 0
      %729 = vmatpush1.bf16.xpose.msra.mxu0 %v708
      %730 = vmatprep.subr.bf16.mxu0 0
      %731 = vmatpush1.bf16.xpose.msra.mxu0 %v705
      %732 = vmatprep.subr.bf16.mxu0 0
      %733 = vmatpush2.bf16.xpose.msra.mxu0 0
      %734 = vmatprep.subr.bf16.mxu0 0
      %735 = vmatpush2.bf16.xpose.msra.mxu0 0
      %736 = vmatprep.subr.bf16.mxu0 0
      %737 = vmatpush2.bf16.xpose.msra.mxu0 0
      %738 = vmatprep.subr.bf16.mxu0 0
      %739 = vmatpush2.bf16.xpose.msra.mxu0 0
      %740 = vmatprep.subr.bf16.mxu0 0
      %741 = vmatpush2.bf16.xpose.msra.mxu0 0
      %742 = vmatprep.subr.bf16.mxu0 0
      %743 = vmatpush2.bf16.xpose.msra.mxu0 0
      %744 = vmatprep.subr.bf16.mxu0 0
      %745 = vmatpush2.bf16.xpose.msra.mxu0 0
      %746 = vmatprep.subr.bf16.mxu0 0
      %747 = vmatpush2.bf16.xpose.msra.mxu0 0
      %748 = vmatprep.mubr.bf16.mxu0 0
      %749 = vmatmul.mubr.bf16.gmra.mxu0 %v693
      %v750 = vpop.f32.mrf.mxu0
      %v751 = vadd.f32 0.0, %v750
      %v752 = vpop.f32.mrf.mxu0
      %v753 = vpop.f32.mrf.mxu0
      %v754 = vadd.f32 0.0, %v753
      %v755 = vpop.f32.mrf.mxu0
      %756 = vmatprep.mubr.bf16.mxu0 0
      %757 = vmatmul.mubr.bf16.gmra.mxu0 %v696
      %v758 = vpop.f32.mrf.mxu0
      %v759 = vadd.f32 0.0, %v758
      %v760 = vpop.f32.mrf.mxu0
      %v761 = vpop.f32.mrf.mxu0
      %v762 = vadd.f32 0.0, %v761
      %v763 = vpop.f32.mrf.mxu0
      %764 = vmatprep.mubr.bf16.mxu0 0
      %765 = vmatmul.mubr.bf16.gmra.mxu0 %v699
      %v766 = vpop.f32.mrf.mxu0
      %v767 = vadd.f32 0.0, %v766
      %v768 = vpop.f32.mrf.mxu0
      %v769 = vpop.f32.mrf.mxu0
      %v770 = vadd.f32 0.0, %v769
      %v771 = vpop.f32.mrf.mxu0
      %772 = vmatprep.mubr.bf16.mxu0 0
      %773 = vmatmul.mubr.bf16.gmra.mxu0 %v702
      %v774 = vpop.f32.mrf.mxu0
      %v775 = vadd.f32 0.0, %v774
      %v776 = vpop.f32.mrf.mxu0
      %v777 = vpop.f32.mrf.mxu0
      %v778 = vadd.f32 0.0, %v777
      %v779 = vpop.f32.mrf.mxu0
      %780 = vdwg.mxu0
      %v781 = vsel %vm374, %v751, -inf
      %782 = vmax.xlane.f32.xlu0 %v781
      %v783 = vpop.xlane.xlu0 %782
      %v784 = vsel %vm374, %v754, -inf
      %785 = vmax.xlane.f32.xlu0 %v784
      %v786 = vpop.xlane.xlu0 %785
      %v787 = vsel %vm374, %v759, -inf
      %788 = vmax.xlane.f32.xlu0 %v787
      %v789 = vpop.xlane.xlu0 %788
      %v790 = vsel %vm374, %v762, -inf
      %791 = vmax.xlane.f32.xlu0 %v790
      %v792 = vpop.xlane.xlu0 %791
      %v793 = vsel %vm374, %v767, -inf
      %794 = vmax.xlane.f32.xlu0 %v793
      %v795 = vpop.xlane.xlu0 %794
      %v796 = vsel %vm374, %v770, -inf
      %797 = vmax.xlane.f32.xlu0 %v796
      %v798 = vpop.xlane.xlu0 %797
      %v799 = vsel %vm374, %v775, -inf
      %800 = vmax.xlane.f32.xlu0 %v799
      %v801 = vpop.xlane.xlu0 %800
      %v802 = vsel %vm374, %v778, -inf
      %803 = vmax.xlane.f32.xlu0 %v802
      %v804 = vpop.xlane.xlu0 %803
      %v805 = vsub.f32 %v751, %v783
      %v806 = vsub.f32 %v754, %v786
      %v807 = vsub.f32 %v759, %v789
      %v808 = vsub.f32 %v762, %v792
      %v809 = vsub.f32 %v767, %v795
      %v810 = vsub.f32 %v770, %v798
      %v811 = vsub.f32 %v775, %v801
      %v812 = vsub.f32 %v778, %v804
      %v813 = vmul.f32 %v805, 1.442695
      %v814 = vpow.pop %v813
      %v815 = vmul.f32 %v806, 1.442695
      %v816 = vpow.pop %v815
      %v817 = vmul.f32 %v807, 1.442695
      %v818 = vpow.pop %v817
      %v819 = vmul.f32 %v808, 1.442695
      %v820 = vpow.pop %v819
      %v821 = vmul.f32 %v809, 1.442695
      %v822 = vpow.pop %v821
      %v823 = vmul.f32 %v810, 1.442695
      %v824 = vpow.pop %v823
      %v825 = vmul.f32 %v811, 1.442695
      %v826 = vpow.pop %v825
      %v827 = vmul.f32 %v812, 1.442695
      %v828 = vpow.pop %v827
      %v829 = vsel %vm374, %v814, 0.0
      %830 = vadd.xlane.f32.xlu0 %v829
      %v831 = vpop.xlane.xlu0 %830
      %v832 = vsel %vm374, %v816, 0.0
      %833 = vadd.xlane.f32.xlu0 %v832
      %v834 = vpop.xlane.xlu0 %833
      %v835 = vsel %vm374, %v818, 0.0
      %836 = vadd.xlane.f32.xlu0 %v835
      %v837 = vpop.xlane.xlu0 %836
      %v838 = vsel %vm374, %v820, 0.0
      %839 = vadd.xlane.f32.xlu0 %v838
      %v840 = vpop.xlane.xlu0 %839
      %v841 = vsel %vm374, %v822, 0.0
      %842 = vadd.xlane.f32.xlu0 %v841
      %v843 = vpop.xlane.xlu0 %842
      %v844 = vsel %vm374, %v824, 0.0
      %845 = vadd.xlane.f32.xlu0 %v844
      %v846 = vpop.xlane.xlu0 %845
      %v847 = vsel %vm374, %v826, 0.0
      %848 = vadd.xlane.f32.xlu0 %v847
      %v849 = vpop.xlane.xlu0 %848
      %v850 = vsel %vm374, %v828, 0.0
      %851 = vadd.xlane.f32.xlu0 %v850
      %v852 = vpop.xlane.xlu0 %851
      %v853 = vrcp.pop %v831
      %v854 = vrcp.pop %v834
      %v855 = vrcp.pop %v837
      %v856 = vrcp.pop %v840
      %v857 = vrcp.pop %v843
      %v858 = vrcp.pop %v846
      %v859 = vrcp.pop %v849
      %v860 = vrcp.pop %v852
      %v861 = vmul.f32 %v814, %v853
      %v862 = vmul.f32 %v816, %v854
      %v863 = vmul.f32 %v818, %v855
      %v864 = vmul.f32 %v820, %v856
      %v865 = vmul.f32 %v822, %v857
      %v866 = vmul.f32 %v824, %v858
      %v867 = vmul.f32 %v826, %v859
      %v868 = vmul.f32 %v828, %v860
      %v869 = vpack.c.bf16 %v862, %v861
      %v870 = vpack.c.bf16 %v864, %v863
      %v871 = vpack.c.bf16 %v866, %v865
      %v872 = vpack.c.bf16 %v868, %v867
      %v874 = vsel %vm374, %v869, 0
      %v877 = vsel %vm374, %v870, 0
      %v880 = vsel %vm374, %v871, 0
      %v883 = vsel %vm374, %v872, 0
      %885 = vmatprep.subr.bf16.mxu0 0
      %886 = vmatpush1.bf16.msra.mxu0 0
      %887 = vmatprep.subr.bf16.mxu0 0
      %888 = vmatpush1.bf16.msra.mxu0 0
      %889 = vmatprep.subr.bf16.mxu0 0
      %890 = vmatpush1.bf16.msra.mxu0 0
      %891 = vmatprep.subr.bf16.mxu0 0
      %892 = vmatpush1.bf16.msra.mxu0 0
      %893 = vmatprep.subr.bf16.mxu0 0
      %894 = vmatpush1.bf16.msra.mxu0 %v678
      %895 = vmatprep.subr.bf16.mxu0 0
      %896 = vmatpush1.bf16.msra.mxu0 %v677
      %897 = vmatprep.subr.bf16.mxu0 0
      %898 = vmatpush1.bf16.msra.mxu0 %v676
      %899 = vmatprep.subr.bf16.mxu0 0
      %900 = vmatpush1.bf16.msra.mxu0 %v675
      %901 = vmatprep.subr.bf16.mxu0 0
      %902 = vmatpush2.bf16.msra.mxu0 0
      %903 = vmatprep.subr.bf16.mxu0 0
      %904 = vmatpush2.bf16.msra.mxu0 0
      %905 = vmatprep.subr.bf16.mxu0 0
      %906 = vmatpush2.bf16.msra.mxu0 0
      %907 = vmatprep.subr.bf16.mxu0 0
      %908 = vmatpush2.bf16.msra.mxu0 0
      %909 = vmatprep.subr.bf16.mxu0 0
      %910 = vmatpush2.bf16.msra.mxu0 0
      %911 = vmatprep.subr.bf16.mxu0 0
      %912 = vmatpush2.bf16.msra.mxu0 0
      %913 = vmatprep.subr.bf16.mxu0 0
      %914 = vmatpush2.bf16.msra.mxu0 0
      %915 = vmatprep.subr.bf16.mxu0 0
      %916 = vmatpush2.bf16.msra.mxu0 0
      %917 = vmatprep.mubr.bf16.mxu0 0
      %918 = vmatmul.mubr.bf16.gmra.mxu0 %v874
      %v919 = vpop.f32.mrf.mxu0
      %v920 = vadd.f32 0.0, %v919
      %v921 = vpop.f32.mrf.mxu0
      %v922 = vpop.f32.mrf.mxu0
      %v923 = vadd.f32 0.0, %v922
      %v924 = vpop.f32.mrf.mxu0
      %925 = vmatprep.mubr.bf16.mxu0 0
      %926 = vmatmul.mubr.bf16.gmra.mxu0 %v877
      %v927 = vpop.f32.mrf.mxu0
      %v928 = vadd.f32 0.0, %v927
      %v929 = vpop.f32.mrf.mxu0
      %v930 = vpop.f32.mrf.mxu0
      %v931 = vadd.f32 0.0, %v930
      %v932 = vpop.f32.mrf.mxu0
      %933 = vmatprep.mubr.bf16.mxu0 0
      %934 = vmatmul.mubr.bf16.gmra.mxu0 %v880
      %v935 = vpop.f32.mrf.mxu0
      %v936 = vadd.f32 0.0, %v935
      %v937 = vpop.f32.mrf.mxu0
      %v938 = vpop.f32.mrf.mxu0
      %v939 = vadd.f32 0.0, %v938
      %v940 = vpop.f32.mrf.mxu0
      %941 = vmatprep.mubr.bf16.mxu0 0
      %942 = vmatmul.mubr.bf16.gmra.mxu0 %v883
      %v943 = vpop.f32.mrf.mxu0
      %v944 = vadd.f32 0.0, %v943
      %v945 = vpop.f32.mrf.mxu0
      %v946 = vpop.f32.mrf.mxu0
      %v947 = vadd.f32 0.0, %v946
      %v948 = vpop.f32.mrf.mxu0
      %949 = vdwg.mxu0
      %954 = vrot.lane.b32.xlu0 %v667, 112
      %v955 = vpop.permute.xlu0 %954
      %956 = vrot.lane.b32.xlu0 %v668, 112
      %v957 = vpop.permute.xlu0 %956
      %958 = vrot.lane.b32.xlu0 %v669, 112
      %v959 = vpop.permute.xlu0 %958
      %960 = vrot.lane.b32.xlu0 %v670, 112
      %v961 = vpop.permute.xlu0 %960
      %962 = vrot.lane.b32.xlu0 %v671, 48
      %v963 = vpop.permute.xlu0 %962
      %964 = vrot.lane.b32.xlu0 %v672, 48
      %v965 = vpop.permute.xlu0 %964
      %966 = vrot.lane.b32.xlu0 %v673, 48
      %v967 = vpop.permute.xlu0 %966
      %968 = vrot.lane.b32.xlu0 %v674, 48
      %v969 = vpop.permute.xlu0 %968
      %v971 = vsel %vm691, %v955, 0
      %v974 = vsel %vm691, %v957, 0
      %v977 = vsel %vm691, %v959, 0
      %v980 = vsel %vm691, %v961, 0
      %v983 = vsel %vm691, %v963, 0
      %v986 = vsel %vm691, %v965, 0
      %v989 = vsel %vm691, %v967, 0
      %v992 = vsel %vm691, %v969, 0
      %994 = vmatprep.subr.bf16.mxu0 0
      %995 = vmatpush1.bf16.xpose.msra.mxu0 0
      %996 = vmatprep.subr.bf16.mxu0 0
      %997 = vmatpush1.bf16.xpose.msra.mxu0 0
      %998 = vmatprep.subr.bf16.mxu0 0
      %999 = vmatpush1.bf16.xpose.msra.mxu0 0
      %1000 = vmatprep.subr.bf16.mxu0 0
      %1001 = vmatpush1.bf16.xpose.msra.mxu0 0
      %1002 = vmatprep.subr.bf16.mxu0 0
      %1003 = vmatpush1.bf16.xpose.msra.mxu0 %v992
      %1004 = vmatprep.subr.bf16.mxu0 0
      %1005 = vmatpush1.bf16.xpose.msra.mxu0 %v989
      %1006 = vmatprep.subr.bf16.mxu0 0
      %1007 = vmatpush1.bf16.xpose.msra.mxu0 %v986
      %1008 = vmatprep.subr.bf16.mxu0 0
      %1009 = vmatpush1.bf16.xpose.msra.mxu0 %v983
      %1010 = vmatprep.subr.bf16.mxu0 0
      %1011 = vmatpush2.bf16.xpose.msra.mxu0 0
      %1012 = vmatprep.subr.bf16.mxu0 0
      %1013 = vmatpush2.bf16.xpose.msra.mxu0 0
      %1014 = vmatprep.subr.bf16.mxu0 0
      %1015 = vmatpush2.bf16.xpose.msra.mxu0 0
      %1016 = vmatprep.subr.bf16.mxu0 0
      %1017 = vmatpush2.bf16.xpose.msra.mxu0 0
      %1018 = vmatprep.subr.bf16.mxu0 0
      %1019 = vmatpush2.bf16.xpose.msra.mxu0 0
      %1020 = vmatprep.subr.bf16.mxu0 0
      %1021 = vmatpush2.bf16.xpose.msra.mxu0 0
      %1022 = vmatprep.subr.bf16.mxu0 0
      %1023 = vmatpush2.bf16.xpose.msra.mxu0 0
      %1024 = vmatprep.subr.bf16.mxu0 0
      %1025 = vmatpush2.bf16.xpose.msra.mxu0 0
      %1026 = vmatprep.mubr.bf16.mxu0 0
      %1027 = vmatmul.mubr.bf16.gmra.mxu0 %v971
      %v1028 = vpop.f32.mrf.mxu0
      %v1029 = vadd.f32 0.0, %v1028
      %v1030 = vpop.f32.mrf.mxu0
      %v1031 = vpop.f32.mrf.mxu0
      %v1032 = vadd.f32 0.0, %v1031
      %v1033 = vpop.f32.mrf.mxu0
      %1034 = vmatprep.mubr.bf16.mxu0 0
      %1035 = vmatmul.mubr.bf16.gmra.mxu0 %v974
      %v1036 = vpop.f32.mrf.mxu0
      %v1037 = vadd.f32 0.0, %v1036
      %v1038 = vpop.f32.mrf.mxu0
      %v1039 = vpop.f32.mrf.mxu0
      %v1040 = vadd.f32 0.0, %v1039
      %v1041 = vpop.f32.mrf.mxu0
      %1042 = vmatprep.mubr.bf16.mxu0 0
      %1043 = vmatmul.mubr.bf16.gmra.mxu0 %v977
      %v1044 = vpop.f32.mrf.mxu0
      %v1045 = vadd.f32 0.0, %v1044
      %v1046 = vpop.f32.mrf.mxu0
      %v1047 = vpop.f32.mrf.mxu0
      %v1048 = vadd.f32 0.0, %v1047
      %v1049 = vpop.f32.mrf.mxu0
      %1050 = vmatprep.mubr.bf16.mxu0 0
      %1051 = vmatmul.mubr.bf16.gmra.mxu0 %v980
      %v1052 = vpop.f32.mrf.mxu0
      %v1053 = vadd.f32 0.0, %v1052
      %v1054 = vpop.f32.mrf.mxu0
      %v1055 = vpop.f32.mrf.mxu0
      %v1056 = vadd.f32 0.0, %v1055
      %v1057 = vpop.f32.mrf.mxu0
      %1058 = vdwg.mxu0
      %v1059 = vsel %vm374, %v1029, -inf
      %1060 = vmax.xlane.f32.xlu0 %v1059
      %v1061 = vpop.xlane.xlu0 %1060
      %v1062 = vsel %vm374, %v1032, -inf
      %1063 = vmax.xlane.f32.xlu0 %v1062
      %v1064 = vpop.xlane.xlu0 %1063
      %v1065 = vsel %vm374, %v1037, -inf
      %1066 = vmax.xlane.f32.xlu0 %v1065
      %v1067 = vpop.xlane.xlu0 %1066
      %v1068 = vsel %vm374, %v1040, -inf
      %1069 = vmax.xlane.f32.xlu0 %v1068
      %v1070 = vpop.xlane.xlu0 %1069
      %v1071 = vsel %vm374, %v1045, -inf
      %1072 = vmax.xlane.f32.xlu0 %v1071
      %v1073 = vpop.xlane.xlu0 %1072
      %v1074 = vsel %vm374, %v1048, -inf
      %1075 = vmax.xlane.f32.xlu0 %v1074
      %v1076 = vpop.xlane.xlu0 %1075
      %v1077 = vsel %vm374, %v1053, -inf
      %1078 = vmax.xlane.f32.xlu0 %v1077
      %v1079 = vpop.xlane.xlu0 %1078
      %v1080 = vsel %vm374, %v1056, -inf
      %1081 = vmax.xlane.f32.xlu0 %v1080
      %v1082 = vpop.xlane.xlu0 %1081
      %v1083 = vsub.f32 %v1029, %v1061
      %v1084 = vsub.f32 %v1032, %v1064
      %v1085 = vsub.f32 %v1037, %v1067
      %v1086 = vsub.f32 %v1040, %v1070
      %v1087 = vsub.f32 %v1045, %v1073
      %v1088 = vsub.f32 %v1048, %v1076
      %v1089 = vsub.f32 %v1053, %v1079
      %v1090 = vsub.f32 %v1056, %v1082
      %v1091 = vmul.f32 %v1083, 1.442695
      %v1092 = vpow.pop %v1091
      %v1093 = vmul.f32 %v1084, 1.442695
      %v1094 = vpow.pop %v1093
      %v1095 = vmul.f32 %v1085, 1.442695
      %v1096 = vpow.pop %v1095
      %v1097 = vmul.f32 %v1086, 1.442695
      %v1098 = vpow.pop %v1097
      %v1099 = vmul.f32 %v1087, 1.442695
      %v1100 = vpow.pop %v1099
      %v1101 = vmul.f32 %v1088, 1.442695
      %v1102 = vpow.pop %v1101
      %v1103 = vmul.f32 %v1089, 1.442695
      %v1104 = vpow.pop %v1103
      %v1105 = vmul.f32 %v1090, 1.442695
      %v1106 = vpow.pop %v1105
      %v1107 = vsel %vm374, %v1092, 0.0
      %1108 = vadd.xlane.f32.xlu0 %v1107
      %v1109 = vpop.xlane.xlu0 %1108
      %v1110 = vsel %vm374, %v1094, 0.0
      %1111 = vadd.xlane.f32.xlu0 %v1110
      %v1112 = vpop.xlane.xlu0 %1111
      %v1113 = vsel %vm374, %v1096, 0.0
      %1114 = vadd.xlane.f32.xlu0 %v1113
      %v1115 = vpop.xlane.xlu0 %1114
      %v1116 = vsel %vm374, %v1098, 0.0
      %1117 = vadd.xlane.f32.xlu0 %v1116
      %v1118 = vpop.xlane.xlu0 %1117
      %v1119 = vsel %vm374, %v1100, 0.0
      %1120 = vadd.xlane.f32.xlu0 %v1119
      %v1121 = vpop.xlane.xlu0 %1120
      %v1122 = vsel %vm374, %v1102, 0.0
      %1123 = vadd.xlane.f32.xlu0 %v1122
      %v1124 = vpop.xlane.xlu0 %1123
      %v1125 = vsel %vm374, %v1104, 0.0
      %1126 = vadd.xlane.f32.xlu0 %v1125
      %v1127 = vpop.xlane.xlu0 %1126
      %v1128 = vsel %vm374, %v1106, 0.0
      %1129 = vadd.xlane.f32.xlu0 %v1128
      %v1130 = vpop.xlane.xlu0 %1129
      %v1131 = vrcp.pop %v1109
      %v1132 = vrcp.pop %v1112
      %v1133 = vrcp.pop %v1115
      %v1134 = vrcp.pop %v1118
      %v1135 = vrcp.pop %v1121
      %v1136 = vrcp.pop %v1124
      %v1137 = vrcp.pop %v1127
      %v1138 = vrcp.pop %v1130
      %v1139 = vmul.f32 %v1092, %v1131
      %v1140 = vmul.f32 %v1094, %v1132
      %v1141 = vmul.f32 %v1096, %v1133
      %v1142 = vmul.f32 %v1098, %v1134
      %v1143 = vmul.f32 %v1100, %v1135
      %v1144 = vmul.f32 %v1102, %v1136
      %v1145 = vmul.f32 %v1104, %v1137
      %v1146 = vmul.f32 %v1106, %v1138
      %v1147 = vpack.c.bf16 %v1140, %v1139
      %v1148 = vpack.c.bf16 %v1142, %v1141
      %v1149 = vpack.c.bf16 %v1144, %v1143
      %v1150 = vpack.c.bf16 %v1146, %v1145
      %1155 = vrot.lane.b32.xlu0 %v675, 112
      %v1156 = vpop.permute.xlu0 %1155
      %1157 = vrot.lane.b32.xlu0 %v676, 112
      %v1158 = vpop.permute.xlu0 %1157
      %1159 = vrot.lane.b32.xlu0 %v677, 112
      %v1160 = vpop.permute.xlu0 %1159
      %1161 = vrot.lane.b32.xlu0 %v678, 112
      %v1162 = vpop.permute.xlu0 %1161
      %v1168 = vsel %vm374, %v1147, 0
      %v1171 = vsel %vm374, %v1148, 0
      %v1174 = vsel %vm374, %v1149, 0
      %v1177 = vsel %vm374, %v1150, 0
      %1179 = vmatprep.subr.bf16.mxu0 0
      %1180 = vmatpush1.bf16.msra.mxu0 0
      %1181 = vmatprep.subr.bf16.mxu0 0
      %1182 = vmatpush1.bf16.msra.mxu0 0
      %1183 = vmatprep.subr.bf16.mxu0 0
      %1184 = vmatpush1.bf16.msra.mxu0 0
      %1185 = vmatprep.subr.bf16.mxu0 0
      %1186 = vmatpush1.bf16.msra.mxu0 0
      %1187 = vmatprep.subr.bf16.mxu0 0
      %1188 = vmatpush1.bf16.msra.mxu0 %v1162
      %1189 = vmatprep.subr.bf16.mxu0 0
      %1190 = vmatpush1.bf16.msra.mxu0 %v1160
      %1191 = vmatprep.subr.bf16.mxu0 0
      %1192 = vmatpush1.bf16.msra.mxu0 %v1158
      %1193 = vmatprep.subr.bf16.mxu0 0
      %1194 = vmatpush1.bf16.msra.mxu0 %v1156
      %1195 = vmatprep.subr.bf16.mxu0 0
      %1196 = vmatpush2.bf16.msra.mxu0 0
      %1197 = vmatprep.subr.bf16.mxu0 0
      %1198 = vmatpush2.bf16.msra.mxu0 0
      %1199 = vmatprep.subr.bf16.mxu0 0
      %1200 = vmatpush2.bf16.msra.mxu0 0
      %1201 = vmatprep.subr.bf16.mxu0 0
      %1202 = vmatpush2.bf16.msra.mxu0 0
      %1203 = vmatprep.subr.bf16.mxu0 0
      %1204 = vmatpush2.bf16.msra.mxu0 0
      %1205 = vmatprep.subr.bf16.mxu0 0
      %1206 = vmatpush2.bf16.msra.mxu0 0
      %1207 = vmatprep.subr.bf16.mxu0 0
      %1208 = vmatpush2.bf16.msra.mxu0 0
      %1209 = vmatprep.subr.bf16.mxu0 0
      %1210 = vmatpush2.bf16.msra.mxu0 0
      %1211 = vmatprep.mubr.bf16.mxu0 0
      %1212 = vmatmul.mubr.bf16.gmra.mxu0 %v1168
      %v1213 = vpop.f32.mrf.mxu0
      %v1214 = vadd.f32 0.0, %v1213
      %v1215 = vpop.f32.mrf.mxu0
      %v1216 = vpop.f32.mrf.mxu0
      %v1217 = vadd.f32 0.0, %v1216
      %v1218 = vpop.f32.mrf.mxu0
      %1219 = vmatprep.mubr.bf16.mxu0 0
      %1220 = vmatmul.mubr.bf16.gmra.mxu0 %v1171
      %v1221 = vpop.f32.mrf.mxu0
      %v1222 = vadd.f32 0.0, %v1221
      %v1223 = vpop.f32.mrf.mxu0
      %v1224 = vpop.f32.mrf.mxu0
      %v1225 = vadd.f32 0.0, %v1224
      %v1226 = vpop.f32.mrf.mxu0
      %1227 = vmatprep.mubr.bf16.mxu0 0
      %1228 = vmatmul.mubr.bf16.gmra.mxu0 %v1174
      %v1229 = vpop.f32.mrf.mxu0
      %v1230 = vadd.f32 0.0, %v1229
      %v1231 = vpop.f32.mrf.mxu0
      %v1232 = vpop.f32.mrf.mxu0
      %v1233 = vadd.f32 0.0, %v1232
      %v1234 = vpop.f32.mrf.mxu0
      %1235 = vmatprep.mubr.bf16.mxu0 0
      %1236 = vmatmul.mubr.bf16.gmra.mxu0 %v1177
      %v1237 = vpop.f32.mrf.mxu0
      %v1238 = vadd.f32 0.0, %v1237
      %v1239 = vpop.f32.mrf.mxu0
      %v1240 = vpop.f32.mrf.mxu0
      %v1241 = vadd.f32 0.0, %v1240
      %v1242 = vpop.f32.mrf.mxu0
      %1243 = vdwg.mxu0
      %1244 = vrot.lane.b32.xlu0 %v667, 96
      %v1245 = vpop.permute.xlu0 %1244
      %1246 = vrot.lane.b32.xlu0 %v668, 96
      %v1247 = vpop.permute.xlu0 %1246
      %1248 = vrot.lane.b32.xlu0 %v669, 96
      %v1249 = vpop.permute.xlu0 %1248
      %1250 = vrot.lane.b32.xlu0 %v670, 96
      %v1251 = vpop.permute.xlu0 %1250
      %1252 = vrot.lane.b32.xlu0 %v671, 32
      %v1253 = vpop.permute.xlu0 %1252
      %1254 = vrot.lane.b32.xlu0 %v672, 32
      %v1255 = vpop.permute.xlu0 %1254
      %1256 = vrot.lane.b32.xlu0 %v673, 32
      %v1257 = vpop.permute.xlu0 %1256
      %1258 = vrot.lane.b32.xlu0 %v674, 32
      %v1259 = vpop.permute.xlu0 %1258
      %v1261 = vsel %vm691, %v1245, 0
      %v1264 = vsel %vm691, %v1247, 0
      %v1267 = vsel %vm691, %v1249, 0
      %v1270 = vsel %vm691, %v1251, 0
      %v1273 = vsel %vm691, %v1253, 0
      %v1276 = vsel %vm691, %v1255, 0
      %v1279 = vsel %vm691, %v1257, 0
      %v1282 = vsel %vm691, %v1259, 0
      %1284 = vmatprep.subr.bf16.mxu0 0
      %1285 = vmatpush1.bf16.xpose.msra.mxu0 0
      %1286 = vmatprep.subr.bf16.mxu0 0
      %1287 = vmatpush1.bf16.xpose.msra.mxu0 0
      %1288 = vmatprep.subr.bf16.mxu0 0
      %1289 = vmatpush1.bf16.xpose.msra.mxu0 0
      %1290 = vmatprep.subr.bf16.mxu0 0
      %1291 = vmatpush1.bf16.xpose.msra.mxu0 0
      %1292 = vmatprep.subr.bf16.mxu0 0
      %1293 = vmatpush1.bf16.xpose.msra.mxu0 %v1282
      %1294 = vmatprep.subr.bf16.mxu0 0
      %1295 = vmatpush1.bf16.xpose.msra.mxu0 %v1279
      %1296 = vmatprep.subr.bf16.mxu0 0
      %1297 = vmatpush1.bf16.xpose.msra.mxu0 %v1276
      %1298 = vmatprep.subr.bf16.mxu0 0
      %1299 = vmatpush1.bf16.xpose.msra.mxu0 %v1273
      %1300 = vmatprep.subr.bf16.mxu0 0
      %1301 = vmatpush2.bf16.xpose.msra.mxu0 0
      %1302 = vmatprep.subr.bf16.mxu0 0
      %1303 = vmatpush2.bf16.xpose.msra.mxu0 0
      %1304 = vmatprep.subr.bf16.mxu0 0
      %1305 = vmatpush2.bf16.xpose.msra.mxu0 0
      %1306 = vmatprep.subr.bf16.mxu0 0
      %1307 = vmatpush2.bf16.xpose.msra.mxu0 0
      %1308 = vmatprep.subr.bf16.mxu0 0
      %1309 = vmatpush2.bf16.xpose.msra.mxu0 0
      %1310 = vmatprep.subr.bf16.mxu0 0
      %1311 = vmatpush2.bf16.xpose.msra.mxu0 0
      %1312 = vmatprep.subr.bf16.mxu0 0
      %1313 = vmatpush2.bf16.xpose.msra.mxu0 0
      %1314 = vmatprep.subr.bf16.mxu0 0
      %1315 = vmatpush2.bf16.xpose.msra.mxu0 0
      %1316 = vmatprep.mubr.bf16.mxu0 0
      %1317 = vmatmul.mubr.bf16.gmra.mxu0 %v1261
      %v1318 = vpop.f32.mrf.mxu0
      %v1319 = vadd.f32 0.0, %v1318
      %v1320 = vpop.f32.mrf.mxu0
      %v1321 = vpop.f32.mrf.mxu0
      %v1322 = vadd.f32 0.0, %v1321
      %v1323 = vpop.f32.mrf.mxu0
      %1324 = vmatprep.mubr.bf16.mxu0 0
      %1325 = vmatmul.mubr.bf16.gmra.mxu0 %v1264
      %v1326 = vpop.f32.mrf.mxu0
      %v1327 = vadd.f32 0.0, %v1326
      %v1328 = vpop.f32.mrf.mxu0
      %v1329 = vpop.f32.mrf.mxu0
      %v1330 = vadd.f32 0.0, %v1329
      %v1331 = vpop.f32.mrf.mxu0
      %1332 = vmatprep.mubr.bf16.mxu0 0
      %1333 = vmatmul.mubr.bf16.gmra.mxu0 %v1267
      %v1334 = vpop.f32.mrf.mxu0
      %v1335 = vadd.f32 0.0, %v1334
      %v1336 = vpop.f32.mrf.mxu0
      %v1337 = vpop.f32.mrf.mxu0
      %v1338 = vadd.f32 0.0, %v1337
      %v1339 = vpop.f32.mrf.mxu0
      %1340 = vmatprep.mubr.bf16.mxu0 0
      %1341 = vmatmul.mubr.bf16.gmra.mxu0 %v1270
      %v1342 = vpop.f32.mrf.mxu0
      %v1343 = vadd.f32 0.0, %v1342
      %v1344 = vpop.f32.mrf.mxu0
      %v1345 = vpop.f32.mrf.mxu0
      %v1346 = vadd.f32 0.0, %v1345
      %v1347 = vpop.f32.mrf.mxu0
      %1348 = vdwg.mxu0
      %v1349 = vsel %vm374, %v1319, -inf
      %1350 = vmax.xlane.f32.xlu0 %v1349
      %v1351 = vpop.xlane.xlu0 %1350
      %v1352 = vsel %vm374, %v1322, -inf
      %1353 = vmax.xlane.f32.xlu0 %v1352
      %v1354 = vpop.xlane.xlu0 %1353
      %v1355 = vsel %vm374, %v1327, -inf
      %1356 = vmax.xlane.f32.xlu0 %v1355
      %v1357 = vpop.xlane.xlu0 %1356
      %v1358 = vsel %vm374, %v1330, -inf
      %1359 = vmax.xlane.f32.xlu0 %v1358
      %v1360 = vpop.xlane.xlu0 %1359
      %v1361 = vsel %vm374, %v1335, -inf
      %1362 = vmax.xlane.f32.xlu0 %v1361
      %v1363 = vpop.xlane.xlu0 %1362
      %v1364 = vsel %vm374, %v1338, -inf
      %1365 = vmax.xlane.f32.xlu0 %v1364
      %v1366 = vpop.xlane.xlu0 %1365
      %v1367 = vsel %vm374, %v1343, -inf
      %1368 = vmax.xlane.f32.xlu0 %v1367
      %v1369 = vpop.xlane.xlu0 %1368
      %v1370 = vsel %vm374, %v1346, -inf
      %1371 = vmax.xlane.f32.xlu0 %v1370
      %v1372 = vpop.xlane.xlu0 %1371
      %v1373 = vsub.f32 %v1319, %v1351
      %v1374 = vsub.f32 %v1322, %v1354
      %v1375 = vsub.f32 %v1327, %v1357
      %v1376 = vsub.f32 %v1330, %v1360
      %v1377 = vsub.f32 %v1335, %v1363
      %v1378 = vsub.f32 %v1338, %v1366
      %v1379 = vsub.f32 %v1343, %v1369
      %v1380 = vsub.f32 %v1346, %v1372
      %v1381 = vmul.f32 %v1373, 1.442695
      %v1382 = vpow.pop %v1381
      %v1383 = vmul.f32 %v1374, 1.442695
      %v1384 = vpow.pop %v1383
      %v1385 = vmul.f32 %v1375, 1.442695
      %v1386 = vpow.pop %v1385
      %v1387 = vmul.f32 %v1376, 1.442695
      %v1388 = vpow.pop %v1387
      %v1389 = vmul.f32 %v1377, 1.442695
      %v1390 = vpow.pop %v1389
      %v1391 = vmul.f32 %v1378, 1.442695
      %v1392 = vpow.pop %v1391
      %v1393 = vmul.f32 %v1379, 1.442695
      %v1394 = vpow.pop %v1393
      %v1395 = vmul.f32 %v1380, 1.442695
      %v1396 = vpow.pop %v1395
      %v1397 = vsel %vm374, %v1382, 0.0
      %1398 = vadd.xlane.f32.xlu0 %v1397
      %v1399 = vpop.xlane.xlu0 %1398
      %v1400 = vsel %vm374, %v1384, 0.0
      %1401 = vadd.xlane.f32.xlu0 %v1400
      %v1402 = vpop.xlane.xlu0 %1401
      %v1403 = vsel %vm374, %v1386, 0.0
      %1404 = vadd.xlane.f32.xlu0 %v1403
      %v1405 = vpop.xlane.xlu0 %1404
      %v1406 = vsel %vm374, %v1388, 0.0
      %1407 = vadd.xlane.f32.xlu0 %v1406
      %v1408 = vpop.xlane.xlu0 %1407
      %v1409 = vsel %vm374, %v1390, 0.0
      %1410 = vadd.xlane.f32.xlu0 %v1409
      %v1411 = vpop.xlane.xlu0 %1410
      %v1412 = vsel %vm374, %v1392, 0.0
      %1413 = vadd.xlane.f32.xlu0 %v1412
      %v1414 = vpop.xlane.xlu0 %1413
      %v1415 = vsel %vm374, %v1394, 0.0
      %1416 = vadd.xlane.f32.xlu0 %v1415
      %v1417 = vpop.xlane.xlu0 %1416
      %v1418 = vsel %vm374, %v1396, 0.0
      %1419 = vadd.xlane.f32.xlu0 %v1418
      %v1420 = vpop.xlane.xlu0 %1419
      %v1421 = vrcp.pop %v1399
      %v1422 = vrcp.pop %v1402
      %v1423 = vrcp.pop %v1405
      %v1424 = vrcp.pop %v1408
      %v1425 = vrcp.pop %v1411
      %v1426 = vrcp.pop %v1414
      %v1427 = vrcp.pop %v1417
      %v1428 = vrcp.pop %v1420
      %v1429 = vmul.f32 %v1382, %v1421
      %v1430 = vmul.f32 %v1384, %v1422
      %v1431 = vmul.f32 %v1386, %v1423
      %v1432 = vmul.f32 %v1388, %v1424
      %v1433 = vmul.f32 %v1390, %v1425
      %v1434 = vmul.f32 %v1392, %v1426
      %v1435 = vmul.f32 %v1394, %v1427
      %v1436 = vmul.f32 %v1396, %v1428
      %v1437 = vpack.c.bf16 %v1430, %v1429
      %v1438 = vpack.c.bf16 %v1432, %v1431
      %v1439 = vpack.c.bf16 %v1434, %v1433
      %v1440 = vpack.c.bf16 %v1436, %v1435
      %1441 = vrot.lane.b32.xlu0 %v675, 96
      %v1442 = vpop.permute.xlu0 %1441
      %1443 = vrot.lane.b32.xlu0 %v676, 96
      %v1444 = vpop.permute.xlu0 %1443
      %1445 = vrot.lane.b32.xlu0 %v677, 96
      %v1446 = vpop.permute.xlu0 %1445
      %1447 = vrot.lane.b32.xlu0 %v678, 96
      %v1448 = vpop.permute.xlu0 %1447
      %v1454 = vsel %vm374, %v1437, 0
      %v1457 = vsel %vm374, %v1438, 0
      %v1460 = vsel %vm374, %v1439, 0
      %v1463 = vsel %vm374, %v1440, 0
      %1465 = vmatprep.subr.bf16.mxu0 0
      %1466 = vmatpush1.bf16.msra.mxu0 0
      %1467 = vmatprep.subr.bf16.mxu0 0
      %1468 = vmatpush1.bf16.msra.mxu0 0
      %1469 = vmatprep.subr.bf16.mxu0 0
      %1470 = vmatpush1.bf16.msra.mxu0 0
      %1471 = vmatprep.subr.bf16.mxu0 0
      %1472 = vmatpush1.bf16.msra.mxu0 0
      %1473 = vmatprep.subr.bf16.mxu0 0
      %1474 = vmatpush1.bf16.msra.mxu0 %v1448
      %1475 = vmatprep.subr.bf16.mxu0 0
      %1476 = vmatpush1.bf16.msra.mxu0 %v1446
      %1477 = vmatprep.subr.bf16.mxu0 0
      %1478 = vmatpush1.bf16.msra.mxu0 %v1444
      %1479 = vmatprep.subr.bf16.mxu0 0
      %1480 = vmatpush1.bf16.msra.mxu0 %v1442
      %1481 = vmatprep.subr.bf16.mxu0 0
      %1482 = vmatpush2.bf16.msra.mxu0 0
      %1483 = vmatprep.subr.bf16.mxu0 0
      %1484 = vmatpush2.bf16.msra.mxu0 0
      %1485 = vmatprep.subr.bf16.mxu0 0
      %1486 = vmatpush2.bf16.msra.mxu0 0
      %1487 = vmatprep.subr.bf16.mxu0 0
      %1488 = vmatpush2.bf16.msra.mxu0 0
      %1489 = vmatprep.subr.bf16.mxu0 0
      %1490 = vmatpush2.bf16.msra.mxu0 0
      %1491 = vmatprep.subr.bf16.mxu0 0
      %1492 = vmatpush2.bf16.msra.mxu0 0
      %1493 = vmatprep.subr.bf16.mxu0 0
      %1494 = vmatpush2.bf16.msra.mxu0 0
      %1495 = vmatprep.subr.bf16.mxu0 0
      %1496 = vmatpush2.bf16.msra.mxu0 0
      %1497 = vmatprep.mubr.bf16.mxu0 0
      %1498 = vmatmul.mubr.bf16.gmra.mxu0 %v1454
      %v1499 = vpop.f32.mrf.mxu0
      %v1500 = vadd.f32 0.0, %v1499
      %v1501 = vpop.f32.mrf.mxu0
      %v1502 = vpop.f32.mrf.mxu0
      %v1503 = vadd.f32 0.0, %v1502
      %v1504 = vpop.f32.mrf.mxu0
      %1505 = vmatprep.mubr.bf16.mxu0 0
      %1506 = vmatmul.mubr.bf16.gmra.mxu0 %v1457
      %v1507 = vpop.f32.mrf.mxu0
      %v1508 = vadd.f32 0.0, %v1507
      %v1509 = vpop.f32.mrf.mxu0
      %v1510 = vpop.f32.mrf.mxu0
      %v1511 = vadd.f32 0.0, %v1510
      %v1512 = vpop.f32.mrf.mxu0
      %1513 = vmatprep.mubr.bf16.mxu0 0
      %1514 = vmatmul.mubr.bf16.gmra.mxu0 %v1460
      %v1515 = vpop.f32.mrf.mxu0
      %v1516 = vadd.f32 0.0, %v1515
      %v1517 = vpop.f32.mrf.mxu0
      %v1518 = vpop.f32.mrf.mxu0
      %v1519 = vadd.f32 0.0, %v1518
      %v1520 = vpop.f32.mrf.mxu0
      %1521 = vmatprep.mubr.bf16.mxu0 0
      %1522 = vmatmul.mubr.bf16.gmra.mxu0 %v1463
      %v1523 = vpop.f32.mrf.mxu0
      %v1524 = vadd.f32 0.0, %v1523
      %v1525 = vpop.f32.mrf.mxu0
      %v1526 = vpop.f32.mrf.mxu0
      %v1527 = vadd.f32 0.0, %v1526
      %v1528 = vpop.f32.mrf.mxu0
      %1529 = vdwg.mxu0
      %1530 = vrot.lane.b32.xlu0 %v667, 80
      %v1531 = vpop.permute.xlu0 %1530
      %1532 = vrot.lane.b32.xlu0 %v668, 80
      %v1533 = vpop.permute.xlu0 %1532
      %1534 = vrot.lane.b32.xlu0 %v669, 80
      %v1535 = vpop.permute.xlu0 %1534
      %1536 = vrot.lane.b32.xlu0 %v670, 80
      %v1537 = vpop.permute.xlu0 %1536
      %1538 = vrot.lane.b32.xlu0 %v671, 16
      %v1539 = vpop.permute.xlu0 %1538
      %1540 = vrot.lane.b32.xlu0 %v672, 16
      %v1541 = vpop.permute.xlu0 %1540
      %1542 = vrot.lane.b32.xlu0 %v673, 16
      %v1543 = vpop.permute.xlu0 %1542
      %1544 = vrot.lane.b32.xlu0 %v674, 16
      %v1545 = vpop.permute.xlu0 %1544
      %v1547 = vsel %vm691, %v1531, 0
      %v1550 = vsel %vm691, %v1533, 0
      %v1553 = vsel %vm691, %v1535, 0
      %v1556 = vsel %vm691, %v1537, 0
      %v1559 = vsel %vm691, %v1539, 0
      %v1562 = vsel %vm691, %v1541, 0
      %v1565 = vsel %vm691, %v1543, 0
      %v1568 = vsel %vm691, %v1545, 0
      %1570 = vmatprep.subr.bf16.mxu0 0
      %1571 = vmatpush1.bf16.xpose.msra.mxu0 0
      %1572 = vmatprep.subr.bf16.mxu0 0
      %1573 = vmatpush1.bf16.xpose.msra.mxu0 0
      %1574 = vmatprep.subr.bf16.mxu0 0
      %1575 = vmatpush1.bf16.xpose.msra.mxu0 0
      %1576 = vmatprep.subr.bf16.mxu0 0
      %1577 = vmatpush1.bf16.xpose.msra.mxu0 0
      %1578 = vmatprep.subr.bf16.mxu0 0
      %1579 = vmatpush1.bf16.xpose.msra.mxu0 %v1568
      %1580 = vmatprep.subr.bf16.mxu0 0
      %1581 = vmatpush1.bf16.xpose.msra.mxu0 %v1565
      %1582 = vmatprep.subr.bf16.mxu0 0
      %1583 = vmatpush1.bf16.xpose.msra.mxu0 %v1562
      %1584 = vmatprep.subr.bf16.mxu0 0
      %1585 = vmatpush1.bf16.xpose.msra.mxu0 %v1559
      %1586 = vmatprep.subr.bf16.mxu0 0
      %1587 = vmatpush2.bf16.xpose.msra.mxu0 0
      %1588 = vmatprep.subr.bf16.mxu0 0
      %1589 = vmatpush2.bf16.xpose.msra.mxu0 0
      %1590 = vmatprep.subr.bf16.mxu0 0
      %1591 = vmatpush2.bf16.xpose.msra.mxu0 0
      %1592 = vmatprep.subr.bf16.mxu0 0
      %1593 = vmatpush2.bf16.xpose.msra.mxu0 0
      %1594 = vmatprep.subr.bf16.mxu0 0
      %1595 = vmatpush2.bf16.xpose.msra.mxu0 0
      %1596 = vmatprep.subr.bf16.mxu0 0
      %1597 = vmatpush2.bf16.xpose.msra.mxu0 0
      %1598 = vmatprep.subr.bf16.mxu0 0
      %1599 = vmatpush2.bf16.xpose.msra.mxu0 0
      %1600 = vmatprep.subr.bf16.mxu0 0
      %1601 = vmatpush2.bf16.xpose.msra.mxu0 0
      %1602 = vmatprep.mubr.bf16.mxu0 0
      %1603 = vmatmul.mubr.bf16.gmra.mxu0 %v1547
      %v1604 = vpop.f32.mrf.mxu0
      %v1605 = vadd.f32 0.0, %v1604
      %v1606 = vpop.f32.mrf.mxu0
      %v1607 = vpop.f32.mrf.mxu0
      %v1608 = vadd.f32 0.0, %v1607
      %v1609 = vpop.f32.mrf.mxu0
      %1610 = vmatprep.mubr.bf16.mxu0 0
      %1611 = vmatmul.mubr.bf16.gmra.mxu0 %v1550
      %v1612 = vpop.f32.mrf.mxu0
      %v1613 = vadd.f32 0.0, %v1612
      %v1614 = vpop.f32.mrf.mxu0
      %v1615 = vpop.f32.mrf.mxu0
      %v1616 = vadd.f32 0.0, %v1615
      %v1617 = vpop.f32.mrf.mxu0
      %1618 = vmatprep.mubr.bf16.mxu0 0
      %1619 = vmatmul.mubr.bf16.gmra.mxu0 %v1553
      %v1620 = vpop.f32.mrf.mxu0
      %v1621 = vadd.f32 0.0, %v1620
      %v1622 = vpop.f32.mrf.mxu0
      %v1623 = vpop.f32.mrf.mxu0
      %v1624 = vadd.f32 0.0, %v1623
      %v1625 = vpop.f32.mrf.mxu0
      %1626 = vmatprep.mubr.bf16.mxu0 0
      %1627 = vmatmul.mubr.bf16.gmra.mxu0 %v1556
      %v1628 = vpop.f32.mrf.mxu0
      %v1629 = vadd.f32 0.0, %v1628
      %v1630 = vpop.f32.mrf.mxu0
      %v1631 = vpop.f32.mrf.mxu0
      %v1632 = vadd.f32 0.0, %v1631
      %v1633 = vpop.f32.mrf.mxu0
      %1634 = vdwg.mxu0
      %v1635 = vsel %vm374, %v1605, -inf
      %1636 = vmax.xlane.f32.xlu0 %v1635
      %v1637 = vpop.xlane.xlu0 %1636
      %v1638 = vsel %vm374, %v1608, -inf
      %1639 = vmax.xlane.f32.xlu0 %v1638
      %v1640 = vpop.xlane.xlu0 %1639
      %v1641 = vsel %vm374, %v1613, -inf
      %1642 = vmax.xlane.f32.xlu0 %v1641
      %v1643 = vpop.xlane.xlu0 %1642
      %v1644 = vsel %vm374, %v1616, -inf
      %1645 = vmax.xlane.f32.xlu0 %v1644
      %v1646 = vpop.xlane.xlu0 %1645
      %v1647 = vsel %vm374, %v1621, -inf
      %1648 = vmax.xlane.f32.xlu0 %v1647
      %v1649 = vpop.xlane.xlu0 %1648
      %v1650 = vsel %vm374, %v1624, -inf
      %1651 = vmax.xlane.f32.xlu0 %v1650
      %v1652 = vpop.xlane.xlu0 %1651
      %v1653 = vsel %vm374, %v1629, -inf
      %1654 = vmax.xlane.f32.xlu0 %v1653
      %v1655 = vpop.xlane.xlu0 %1654
      %v1656 = vsel %vm374, %v1632, -inf
      %1657 = vmax.xlane.f32.xlu0 %v1656
      %v1658 = vpop.xlane.xlu0 %1657
      %v1659 = vsub.f32 %v1605, %v1637
      %v1660 = vsub.f32 %v1608, %v1640
      %v1661 = vsub.f32 %v1613, %v1643
      %v1662 = vsub.f32 %v1616, %v1646
      %v1663 = vsub.f32 %v1621, %v1649
      %v1664 = vsub.f32 %v1624, %v1652
      %v1665 = vsub.f32 %v1629, %v1655
      %v1666 = vsub.f32 %v1632, %v1658
      %v1667 = vmul.f32 %v1659, 1.442695
      %v1668 = vpow.pop %v1667
      %v1669 = vmul.f32 %v1660, 1.442695
      %v1670 = vpow.pop %v1669
      %v1671 = vmul.f32 %v1661, 1.442695
      %v1672 = vpow.pop %v1671
      %v1673 = vmul.f32 %v1662, 1.442695
      %v1674 = vpow.pop %v1673
      %v1675 = vmul.f32 %v1663, 1.442695
      %v1676 = vpow.pop %v1675
      %v1677 = vmul.f32 %v1664, 1.442695
      %v1678 = vpow.pop %v1677
      %v1679 = vmul.f32 %v1665, 1.442695
      %v1680 = vpow.pop %v1679
      %v1681 = vmul.f32 %v1666, 1.442695
      %v1682 = vpow.pop %v1681
      %v1683 = vsel %vm374, %v1668, 0.0
      %1684 = vadd.xlane.f32.xlu0 %v1683
      %v1685 = vpop.xlane.xlu0 %1684
      %v1686 = vsel %vm374, %v1670, 0.0
      %1687 = vadd.xlane.f32.xlu0 %v1686
      %v1688 = vpop.xlane.xlu0 %1687
      %v1689 = vsel %vm374, %v1672, 0.0
      %1690 = vadd.xlane.f32.xlu0 %v1689
      %v1691 = vpop.xlane.xlu0 %1690
      %v1692 = vsel %vm374, %v1674, 0.0
      %1693 = vadd.xlane.f32.xlu0 %v1692
      %v1694 = vpop.xlane.xlu0 %1693
      %v1695 = vsel %vm374, %v1676, 0.0
      %1696 = vadd.xlane.f32.xlu0 %v1695
      %v1697 = vpop.xlane.xlu0 %1696
      %v1698 = vsel %vm374, %v1678, 0.0
      %1699 = vadd.xlane.f32.xlu0 %v1698
      %v1700 = vpop.xlane.xlu0 %1699
      %v1701 = vsel %vm374, %v1680, 0.0
      %1702 = vadd.xlane.f32.xlu0 %v1701
      %v1703 = vpop.xlane.xlu0 %1702
      %v1704 = vsel %vm374, %v1682, 0.0
      %1705 = vadd.xlane.f32.xlu0 %v1704
      %v1706 = vpop.xlane.xlu0 %1705
      %v1707 = vrcp.pop %v1685
      %v1708 = vrcp.pop %v1688
      %v1709 = vrcp.pop %v1691
      %v1710 = vrcp.pop %v1694
      %v1711 = vrcp.pop %v1697
      %v1712 = vrcp.pop %v1700
      %v1713 = vrcp.pop %v1703
      %v1714 = vrcp.pop %v1706
      %v1715 = vmul.f32 %v1668, %v1707
      %v1716 = vmul.f32 %v1670, %v1708
      %v1717 = vmul.f32 %v1672, %v1709
      %v1718 = vmul.f32 %v1674, %v1710
      %v1719 = vmul.f32 %v1676, %v1711
      %v1720 = vmul.f32 %v1678, %v1712
      %v1721 = vmul.f32 %v1680, %v1713
      %v1722 = vmul.f32 %v1682, %v1714
      %v1723 = vpack.c.bf16 %v1716, %v1715
      %v1724 = vpack.c.bf16 %v1718, %v1717
      %v1725 = vpack.c.bf16 %v1720, %v1719
      %v1726 = vpack.c.bf16 %v1722, %v1721
      %1727 = vrot.lane.b32.xlu0 %v675, 80
      %v1728 = vpop.permute.xlu0 %1727
      %1729 = vrot.lane.b32.xlu0 %v676, 80
      %v1730 = vpop.permute.xlu0 %1729
      %1731 = vrot.lane.b32.xlu0 %v677, 80
      %v1732 = vpop.permute.xlu0 %1731
      %1733 = vrot.lane.b32.xlu0 %v678, 80
      %v1734 = vpop.permute.xlu0 %1733
      %v1740 = vsel %vm374, %v1723, 0
      %v1743 = vsel %vm374, %v1724, 0
      %v1746 = vsel %vm374, %v1725, 0
      %v1749 = vsel %vm374, %v1726, 0
      %1751 = vmatprep.subr.bf16.mxu0 0
      %1752 = vmatpush1.bf16.msra.mxu0 0
      %1753 = vmatprep.subr.bf16.mxu0 0
      %1754 = vmatpush1.bf16.msra.mxu0 0
      %1755 = vmatprep.subr.bf16.mxu0 0
      %1756 = vmatpush1.bf16.msra.mxu0 0
      %1757 = vmatprep.subr.bf16.mxu0 0
      %1758 = vmatpush1.bf16.msra.mxu0 0
      %1759 = vmatprep.subr.bf16.mxu0 0
      %1760 = vmatpush1.bf16.msra.mxu0 %v1734
      %1761 = vmatprep.subr.bf16.mxu0 0
      %1762 = vmatpush1.bf16.msra.mxu0 %v1732
      %1763 = vmatprep.subr.bf16.mxu0 0
      %1764 = vmatpush1.bf16.msra.mxu0 %v1730
      %1765 = vmatprep.subr.bf16.mxu0 0
      %1766 = vmatpush1.bf16.msra.mxu0 %v1728
      %1767 = vmatprep.subr.bf16.mxu0 0
      %1768 = vmatpush2.bf16.msra.mxu0 0
      %1769 = vmatprep.subr.bf16.mxu0 0
      %1770 = vmatpush2.bf16.msra.mxu0 0
      %1771 = vmatprep.subr.bf16.mxu0 0
      %1772 = vmatpush2.bf16.msra.mxu0 0
      %1773 = vmatprep.subr.bf16.mxu0 0
      %1774 = vmatpush2.bf16.msra.mxu0 0
      %1775 = vmatprep.subr.bf16.mxu0 0
      %1776 = vmatpush2.bf16.msra.mxu0 0
      %1777 = vmatprep.subr.bf16.mxu0 0
      %1778 = vmatpush2.bf16.msra.mxu0 0
      %1779 = vmatprep.subr.bf16.mxu0 0
      %1780 = vmatpush2.bf16.msra.mxu0 0
      %1781 = vmatprep.subr.bf16.mxu0 0
      %1782 = vmatpush2.bf16.msra.mxu0 0
      %1783 = vmatprep.mubr.bf16.mxu0 0
      %1784 = vmatmul.mubr.bf16.gmra.mxu0 %v1740
      %v1785 = vpop.f32.mrf.mxu0
      %v1786 = vadd.f32 0.0, %v1785
      %v1787 = vpop.f32.mrf.mxu0
      %v1788 = vpop.f32.mrf.mxu0
      %v1789 = vadd.f32 0.0, %v1788
      %v1790 = vpop.f32.mrf.mxu0
      %1791 = vmatprep.mubr.bf16.mxu0 0
      %1792 = vmatmul.mubr.bf16.gmra.mxu0 %v1743
      %v1793 = vpop.f32.mrf.mxu0
      %v1794 = vadd.f32 0.0, %v1793
      %v1795 = vpop.f32.mrf.mxu0
      %v1796 = vpop.f32.mrf.mxu0
      %v1797 = vadd.f32 0.0, %v1796
      %v1798 = vpop.f32.mrf.mxu0
      %1799 = vmatprep.mubr.bf16.mxu0 0
      %1800 = vmatmul.mubr.bf16.gmra.mxu0 %v1746
      %v1801 = vpop.f32.mrf.mxu0
      %v1802 = vadd.f32 0.0, %v1801
      %v1803 = vpop.f32.mrf.mxu0
      %v1804 = vpop.f32.mrf.mxu0
      %v1805 = vadd.f32 0.0, %v1804
      %v1806 = vpop.f32.mrf.mxu0
      %1807 = vmatprep.mubr.bf16.mxu0 0
      %1808 = vmatmul.mubr.bf16.gmra.mxu0 %v1749
      %v1809 = vpop.f32.mrf.mxu0
      %v1810 = vadd.f32 0.0, %v1809
      %v1811 = vpop.f32.mrf.mxu0
      %v1812 = vpop.f32.mrf.mxu0
      %v1813 = vadd.f32 0.0, %v1812
      %v1814 = vpop.f32.mrf.mxu0
      %1815 = vdwg.mxu0
      %1824 = vrot.lane.b32.xlu0 %v1214, 16
      %v1825 = vpop.permute.xlu0 %1824
      %1826 = vrot.lane.b32.xlu0 %v1217, 16
      %v1827 = vpop.permute.xlu0 %1826
      %1828 = vrot.lane.b32.xlu0 %v1222, 16
      %v1829 = vpop.permute.xlu0 %1828
      %1830 = vrot.lane.b32.xlu0 %v1225, 16
      %v1831 = vpop.permute.xlu0 %1830
      %1832 = vrot.lane.b32.xlu0 %v1230, 16
      %v1833 = vpop.permute.xlu0 %1832
      %1834 = vrot.lane.b32.xlu0 %v1233, 16
      %v1835 = vpop.permute.xlu0 %1834
      %1836 = vrot.lane.b32.xlu0 %v1238, 16
      %v1837 = vpop.permute.xlu0 %1836
      %1838 = vrot.lane.b32.xlu0 %v1241, 16
      %v1839 = vpop.permute.xlu0 %1838
      %1856 = vrot.lane.b32.xlu0 %v1500, 32
      %v1857 = vpop.permute.xlu0 %1856
      %1858 = vrot.lane.b32.xlu0 %v1503, 32
      %v1859 = vpop.permute.xlu0 %1858
      %1860 = vrot.lane.b32.xlu0 %v1508, 32
      %v1861 = vpop.permute.xlu0 %1860
      %1862 = vrot.lane.b32.xlu0 %v1511, 32
      %v1863 = vpop.permute.xlu0 %1862
      %1864 = vrot.lane.b32.xlu0 %v1516, 32
      %v1865 = vpop.permute.xlu0 %1864
      %1866 = vrot.lane.b32.xlu0 %v1519, 32
      %v1867 = vpop.permute.xlu0 %1866
      %1868 = vrot.lane.b32.xlu0 %v1524, 32
      %v1869 = vpop.permute.xlu0 %1868
      %1870 = vrot.lane.b32.xlu0 %v1527, 32
      %v1871 = vpop.permute.xlu0 %1870
      %1888 = vrot.lane.b32.xlu0 %v1786, 48
      %v1889 = vpop.permute.xlu0 %1888
      %1890 = vrot.lane.b32.xlu0 %v1789, 48
      %v1891 = vpop.permute.xlu0 %1890
      %1892 = vrot.lane.b32.xlu0 %v1794, 48
      %v1893 = vpop.permute.xlu0 %1892
      %1894 = vrot.lane.b32.xlu0 %v1797, 48
      %v1895 = vpop.permute.xlu0 %1894
      %1896 = vrot.lane.b32.xlu0 %v1802, 48
      %v1897 = vpop.permute.xlu0 %1896
      %1898 = vrot.lane.b32.xlu0 %v1805, 48
      %v1899 = vpop.permute.xlu0 %1898
      %1900 = vrot.lane.b32.xlu0 %v1810, 48
      %v1901 = vpop.permute.xlu0 %1900
      %1902 = vrot.lane.b32.xlu0 %v1813, 48
      %v1903 = vpop.permute.xlu0 %1902
      %v1912 = vsel %vm691, %v920, %v1825
      %v1913 = vsel %vm691, %v923, %v1827
      %v1914 = vsel %vm691, %v928, %v1829
      %v1915 = vsel %vm691, %v931, %v1831
      %v1916 = vsel %vm691, %v936, %v1833
      %v1917 = vsel %vm691, %v939, %v1835
      %v1918 = vsel %vm691, %v944, %v1837
      %v1919 = vsel %vm691, %v947, %v1839
      %vm1920 = vcmask 261120
      %v1921 = vsel %vm1920, %v1912, %v1857
      %v1922 = vsel %vm1920, %v1913, %v1859
      %v1923 = vsel %vm1920, %v1914, %v1861
      %v1924 = vsel %vm1920, %v1915, %v1863
      %v1925 = vsel %vm1920, %v1916, %v1865
      %v1926 = vsel %vm1920, %v1917, %v1867
      %v1927 = vsel %vm1920, %v1918, %v1869
      %v1928 = vsel %vm1920, %v1919, %v1871
      %vm1929 = vcmask 392192
      %v1930 = vsel %vm1929, %v1921, %v1889
      %v1931 = vsel %vm1929, %v1922, %v1891
      %v1932 = vsel %vm1929, %v1923, %v1893
      %v1933 = vsel %vm1929, %v1924, %v1895
      %v1934 = vsel %vm1929, %v1925, %v1897
      %v1935 = vsel %vm1929, %v1926, %v1899
      %v1936 = vsel %vm1929, %v1927, %v1901
      %v1937 = vsel %vm1929, %v1928, %v1903
      %v1938 = vsel %vm374, %v1930, 0.0
      %1939 = vadd.xlane.f32.xlu0 %v1938
      %v1940 = vpop.xlane.xlu0 %1939
      %v1941 = vsel %vm374, %v1931, 0.0
      %1942 = vadd.xlane.f32.xlu0 %v1941
      %v1943 = vpop.xlane.xlu0 %1942
      %v1944 = vsel %vm374, %v1932, 0.0
      %1945 = vadd.xlane.f32.xlu0 %v1944
      %v1946 = vpop.xlane.xlu0 %1945
      %v1947 = vsel %vm374, %v1933, 0.0
      %1948 = vadd.xlane.f32.xlu0 %v1947
      %v1949 = vpop.xlane.xlu0 %1948
      %v1950 = vsel %vm374, %v1934, 0.0
      %1951 = vadd.xlane.f32.xlu0 %v1950
      %v1952 = vpop.xlane.xlu0 %1951
      %v1953 = vsel %vm374, %v1935, 0.0
      %1954 = vadd.xlane.f32.xlu0 %v1953
      %v1955 = vpop.xlane.xlu0 %1954
      %v1956 = vsel %vm374, %v1936, 0.0
      %1957 = vadd.xlane.f32.xlu0 %v1956
      %v1958 = vpop.xlane.xlu0 %1957
      %v1959 = vsel %vm374, %v1937, 0.0
      %1960 = vadd.xlane.f32.xlu0 %v1959
      %v1961 = vpop.xlane.xlu0 %1960
      %v1962 = vmul.f32 %v1940, %v399
      %v1963 = vmul.f32 %v1943, %v399
      %v1964 = vmul.f32 %v1946, %v399
      %v1965 = vmul.f32 %v1949, %v399
      %v1966 = vmul.f32 %v1952, %v399
      %v1967 = vmul.f32 %v1955, %v399
      %v1968 = vmul.f32 %v1958, %v399
      %v1969 = vmul.f32 %v1961, %v399
      %v1970 = vsub.f32 %v1930, %v1962
      %v1971 = vsub.f32 %v1931, %v1963
      %v1972 = vsub.f32 %v1932, %v1964
      %v1973 = vsub.f32 %v1933, %v1965
      %v1974 = vsub.f32 %v1934, %v1966
      %v1975 = vsub.f32 %v1935, %v1967
      %v1976 = vsub.f32 %v1936, %v1968
      %v1977 = vsub.f32 %v1937, %v1969
      %v1978 = vmul.f32 %v1970, %v1970
      %v1979 = vmul.f32 %v1971, %v1971
      %v1980 = vmul.f32 %v1972, %v1972
      %v1981 = vmul.f32 %v1973, %v1973
      %v1982 = vmul.f32 %v1974, %v1974
      %v1983 = vmul.f32 %v1975, %v1975
      %v1984 = vmul.f32 %v1976, %v1976
      %v1985 = vmul.f32 %v1977, %v1977
      %v1986 = vsel %vm374, %v1978, 0.0
      %1987 = vadd.xlane.f32.xlu0 %v1986
      %v1988 = vpop.xlane.xlu0 %1987
      %v1989 = vsel %vm374, %v1979, 0.0
      %1990 = vadd.xlane.f32.xlu0 %v1989
      %v1991 = vpop.xlane.xlu0 %1990
      %v1992 = vsel %vm374, %v1980, 0.0
      %1993 = vadd.xlane.f32.xlu0 %v1992
      %v1994 = vpop.xlane.xlu0 %1993
      %v1995 = vsel %vm374, %v1981, 0.0
      %1996 = vadd.xlane.f32.xlu0 %v1995
      %v1997 = vpop.xlane.xlu0 %1996
      %v1998 = vsel %vm374, %v1982, 0.0
      %1999 = vadd.xlane.f32.xlu0 %v1998
      %v2000 = vpop.xlane.xlu0 %1999
      %v2001 = vsel %vm374, %v1983, 0.0
      %2002 = vadd.xlane.f32.xlu0 %v2001
      %v2003 = vpop.xlane.xlu0 %2002
      %v2004 = vsel %vm374, %v1984, 0.0
      %2005 = vadd.xlane.f32.xlu0 %v2004
      %v2006 = vpop.xlane.xlu0 %2005
      %v2007 = vsel %vm374, %v1985, 0.0
      %2008 = vadd.xlane.f32.xlu0 %v2007
      %v2009 = vpop.xlane.xlu0 %2008
      %v2010 = vmul.f32 %v1988, %v399
      %v2011 = vmul.f32 %v1991, %v399
      %v2012 = vmul.f32 %v1994, %v399
      %v2013 = vmul.f32 %v1997, %v399
      %v2014 = vmul.f32 %v2000, %v399
      %v2015 = vmul.f32 %v2003, %v399
      %v2016 = vmul.f32 %v2006, %v399
      %v2017 = vmul.f32 %v2009, %v399
      %v2018 = vadd.f32 %v2010, 1e-05
      %v2019 = vadd.f32 %v2011, 1e-05
      %v2020 = vadd.f32 %v2012, 1e-05
      %v2021 = vadd.f32 %v2013, 1e-05
      %v2022 = vadd.f32 %v2014, 1e-05
      %v2023 = vadd.f32 %v2015, 1e-05
      %v2024 = vadd.f32 %v2016, 1e-05
      %v2025 = vadd.f32 %v2017, 1e-05
      %v2026 = vrsqrt.pop %v2018
      %v2027 = vrsqrt.pop %v2019
      %v2028 = vrsqrt.pop %v2020
      %v2029 = vrsqrt.pop %v2021
      %v2030 = vrsqrt.pop %v2022
      %v2031 = vrsqrt.pop %v2023
      %v2032 = vrsqrt.pop %v2024
      %v2033 = vrsqrt.pop %v2025
      %v2034 = vmul.f32 %v1970, %v2026
      %v2035 = vmul.f32 %v1971, %v2027
      %v2036 = vmul.f32 %v1972, %v2028
      %v2037 = vmul.f32 %v1973, %v2029
      %v2038 = vmul.f32 %v1974, %v2030
      %v2039 = vmul.f32 %v1975, %v2031
      %v2040 = vmul.f32 %v1976, %v2032
      %v2041 = vmul.f32 %v1977, %v2033
      %v2042 = vld [vmem:[%s5] sm:$0x1]
      %v2044 = vlaneseq
      %v2045 = vshrl.u32 %v2044, 7
      %v2046 = vsub.s32 0, %v2045
      %v2047 = vrot.slane %v2042, %v2046
      %v2049 = vmul.f32 %v2034, %v2047
      %v2050 = vmul.f32 %v2035, %v2047
      %v2051 = vmul.f32 %v2036, %v2047
      %v2052 = vmul.f32 %v2037, %v2047
      %v2053 = vmul.f32 %v2038, %v2047
      %v2054 = vmul.f32 %v2039, %v2047
      %v2055 = vmul.f32 %v2040, %v2047
      %v2056 = vmul.f32 %v2041, %v2047
      %v2057 = vld [vmem:[%s6] sm:$0x1]
      %v2059 = vlaneseq
      %v2060 = vshrl.u32 %v2059, 7
      %v2061 = vsub.s32 0, %v2060
      %v2062 = vrot.slane %v2057, %v2061
      %v2064 = vadd.f32 %v2049, %v2062
      %v2065 = vadd.f32 %v2050, %v2062
      %v2066 = vadd.f32 %v2051, %v2062
      %v2067 = vadd.f32 %v2052, %v2062
      %v2068 = vadd.f32 %v2053, %v2062
      %v2069 = vadd.f32 %v2054, %v2062
      %v2070 = vadd.f32 %v2055, %v2062
      %v2071 = vadd.f32 %v2056, %v2062
      %v2072 = vpack.c.bf16 %v2065, %v2064
      %v2073 = vpack.c.bf16 %v2067, %v2066
      %v2074 = vpack.c.bf16 %v2069, %v2068
      %v2075 = vpack.c.bf16 %v2071, %v2070
      %v2076 = vld [vmem:[%s7] sm:$0xf]
      %v2077 = vld [vmem:[%s7 + $0x4] sm:$0xf]
      %v2078 = vld [vmem:[%s7 + $0x8] sm:$0xf]
      %v2079 = vld [vmem:[%s7 + $0xc] sm:$0xf]
      %v2080 = vld [vmem:[%s7 + $0x10] sm:$0xf]
      %v2081 = vld [vmem:[%s7 + $0x14] sm:$0xf]
      %v2082 = vld [vmem:[%s7 + $0x18] sm:$0xf]
      %v2083 = vld [vmem:[%s7 + $0x1c] sm:$0xf]
      %v2084 = vld [vmem:[%s8] sm:$0x1]
      %v2086 = vlaneseq
      %v2087 = vshrl.u32 %v2086, 7
      %v2088 = vsub.s32 0, %v2087
      %v2089 = vrot.slane %v2084, %v2088
      %v2099 = vunpack.c.l.b16 %v2076
      %v2100 = vunpack.c.l.b16 %v2077
      %v2101 = vunpack.c.l.b16 %v2078
      %v2102 = vunpack.c.l.b16 %v2079
      %v2103 = vunpack.c.l.b16 %v2080
      %v2104 = vunpack.c.l.b16 %v2081
      %v2105 = vunpack.c.l.b16 %v2082
      %v2106 = vunpack.c.l.b16 %v2083
      %v2107 = vpack.c.b16 %v2100, %v2099
      %v2108 = vpack.c.b16 %v2102, %v2101
      %v2109 = vpack.c.b16 %v2104, %v2103
      %v2110 = vpack.c.b16 %v2106, %v2105
      %v2116 = vsel %vm374, %v2072, 0
      %v2119 = vsel %vm374, %v2073, 0
      %v2122 = vsel %vm374, %v2074, 0
      %v2125 = vsel %vm374, %v2075, 0
      %2127 = vmatprep.subr.bf16.mxu0 0
      %2128 = vmatpush1.bf16.msra.mxu0 0
      %2129 = vmatprep.subr.bf16.mxu0 0
      %2130 = vmatpush1.bf16.msra.mxu0 0
      %2131 = vmatprep.subr.bf16.mxu0 0
      %2132 = vmatpush1.bf16.msra.mxu0 0
      %2133 = vmatprep.subr.bf16.mxu0 0
      %2134 = vmatpush1.bf16.msra.mxu0 0
      %2135 = vmatprep.subr.bf16.mxu0 0
      %2136 = vmatpush1.bf16.msra.mxu0 %v2110
      %2137 = vmatprep.subr.bf16.mxu0 0
      %2138 = vmatpush1.bf16.msra.mxu0 %v2109
      %2139 = vmatprep.subr.bf16.mxu0 0
      %2140 = vmatpush1.bf16.msra.mxu0 %v2108
      %2141 = vmatprep.subr.bf16.mxu0 0
      %2142 = vmatpush1.bf16.msra.mxu0 %v2107
      %2143 = vmatprep.subr.bf16.mxu0 0
      %2144 = vmatpush2.bf16.msra.mxu0 0
      %2145 = vmatprep.subr.bf16.mxu0 0
      %2146 = vmatpush2.bf16.msra.mxu0 0
      %2147 = vmatprep.subr.bf16.mxu0 0
      %2148 = vmatpush2.bf16.msra.mxu0 0
      %2149 = vmatprep.subr.bf16.mxu0 0
      %2150 = vmatpush2.bf16.msra.mxu0 0
      %2151 = vmatprep.subr.bf16.mxu0 0
      %2152 = vmatpush2.bf16.msra.mxu0 0
      %2153 = vmatprep.subr.bf16.mxu0 0
      %2154 = vmatpush2.bf16.msra.mxu0 0
      %2155 = vmatprep.subr.bf16.mxu0 0
      %2156 = vmatpush2.bf16.msra.mxu0 0
      %2157 = vmatprep.subr.bf16.mxu0 0
      %2158 = vmatpush2.bf16.msra.mxu0 0
      %2159 = vmatprep.mubr.bf16.mxu0 0
      %2160 = vmatmul.mubr.bf16.gmra.mxu0 %v2116
      %v2161 = vpop.f32.mrf.mxu0
      %v2162 = vadd.f32 %v2089, %v2161
      %v2163 = vpop.f32.mrf.mxu0
      %v2164 = vpop.f32.mrf.mxu0
      %v2165 = vadd.f32 %v2089, %v2164
      %v2166 = vpop.f32.mrf.mxu0
      %2167 = vmatprep.mubr.bf16.mxu0 0
      %2168 = vmatmul.mubr.bf16.gmra.mxu0 %v2119
      %v2169 = vpop.f32.mrf.mxu0
      %v2170 = vadd.f32 %v2089, %v2169
      %v2171 = vpop.f32.mrf.mxu0
      %v2172 = vpop.f32.mrf.mxu0
      %v2173 = vadd.f32 %v2089, %v2172
      %v2174 = vpop.f32.mrf.mxu0
      %2175 = vmatprep.mubr.bf16.mxu0 0
      %2176 = vmatmul.mubr.bf16.gmra.mxu0 %v2122
      %v2177 = vpop.f32.mrf.mxu0
      %v2178 = vadd.f32 %v2089, %v2177
      %v2179 = vpop.f32.mrf.mxu0
      %v2180 = vpop.f32.mrf.mxu0
      %v2181 = vadd.f32 %v2089, %v2180
      %v2182 = vpop.f32.mrf.mxu0
      %2183 = vmatprep.mubr.bf16.mxu0 0
      %2184 = vmatmul.mubr.bf16.gmra.mxu0 %v2125
      %v2185 = vpop.f32.mrf.mxu0
      %v2186 = vadd.f32 %v2089, %v2185
      %v2187 = vpop.f32.mrf.mxu0
      %v2188 = vpop.f32.mrf.mxu0
      %v2189 = vadd.f32 %v2089, %v2188
      %v2190 = vpop.f32.mrf.mxu0
      %2191 = vdwg.mxu0
      %v2192 = vadd.f32 %v2162, %v358
      %v2193 = vadd.f32 %v2165, %v359
      %v2194 = vadd.f32 %v2170, %v360
      %v2195 = vadd.f32 %v2173, %v361
      %v2196 = vadd.f32 %v2178, %v362
      %v2197 = vadd.f32 %v2181, %v363
      %v2198 = vadd.f32 %v2186, %v364
      %v2199 = vadd.f32 %v2189, %v365
      %2200 = vxpose.xlu0.b32.start [1/16] %v2192, 128
      %2201 = vxpose.xlu0.b32.cont [2/16] %v2193, 128
      %2202 = vxpose.xlu0.b32.cont [3/16] %v2194, 128
      %2203 = vxpose.xlu0.b32.cont [4/16] %v2195, 128
      %2204 = vxpose.xlu0.b32.cont [5/16] %v2196, 128
      %2205 = vxpose.xlu0.b32.cont [6/16] %v2197, 128
      %2206 = vxpose.xlu0.b32.cont [7/16] %v2198, 128
      %2207 = vxpose.xlu0.b32.cont [8/16] %v2199, 128
      %2208 = vxpose.xlu0.b32.cont [9/16] 0.0, 128
      %2209 = vxpose.xlu0.b32.cont [10/16] 0.0, 128
      %2210 = vxpose.xlu0.b32.cont [11/16] 0.0, 128
      %2211 = vxpose.xlu0.b32.cont [12/16] 0.0, 128
      %2212 = vxpose.xlu0.b32.cont [13/16] 0.0, 128
      %2213 = vxpose.xlu0.b32.cont [14/16] 0.0, 128
      %2214 = vxpose.xlu0.b32.cont [15/16] 0.0, 128
      %2215 = vxpose.xlu0.b32.end [16/16] 0.0, 128
      %v2216 = vpop.trf.xlu0
      %v2217 = vpop.trf.xlu0
      %v2218 = vpop.trf.xlu0
      %v2219 = vpop.trf.xlu0
      %v2220 = vpop.trf.xlu0
      %v2221 = vpop.trf.xlu0
      %v2222 = vpop.trf.xlu0
      %v2223 = vpop.trf.xlu0
      %v2224 = vpop.trf.xlu0
      %v2225 = vpop.trf.xlu0
      %v2226 = vpop.trf.xlu0
      %v2227 = vpop.trf.xlu0
      %v2228 = vpop.trf.xlu0
      %v2229 = vpop.trf.xlu0
      %v2230 = vpop.trf.xlu0
      %v2231 = vpop.trf.xlu0
      %2232 = vst.msk [vmem:[%s332] sm:$0xff] %vm374, %v2216
      %2233 = vst.msk [vmem:[%s332 + $0x8] sm:$0xff] %vm374, %v2217
      %2234 = vst.msk [vmem:[%s332 + $0x10] sm:$0xff] %vm374, %v2218
      %2235 = vst.msk [vmem:[%s332 + $0x18] sm:$0xff] %vm374, %v2219
      %2236 = vst.msk [vmem:[%s332 + $0x20] sm:$0xff] %vm374, %v2220
      %2237 = vst.msk [vmem:[%s332 + $0x28] sm:$0xff] %vm374, %v2221
      %2238 = vst.msk [vmem:[%s332 + $0x30] sm:$0xff] %vm374, %v2222
      %2239 = vst.msk [vmem:[%s332 + $0x38] sm:$0xff] %vm374, %v2223
      %p2240 = scmp.lt.s32.totalorder %s20, 1
      %s2241 = scalar_select %p2240, %s20, 1
      %s2242 = smul.addr %s2241, 8
      %s2243 = smul.addr %s2242, 8
      %s2244 = scalar_lea.vmem %s9, %s2243
      // Predicated region
      $region57: #{frequency_time_attention.1} parent=55 // pred_check
        %p2245 = pneg %p232
      $region58: #{frequency_time_attention.1} parent=55 // pred_check_branch
        %2247 = sbr.rel (%p2245) target = $region60
      $region59: #{frequency_time_attention.1} parent=55 // pred_region
        _
      $region60: #{frequency_time_attention.1} parent=55 // pred_fallthru
        _
    $region56: #{frequency_time_attention.1} parent=5 // pred_fallthru
      _
    %p2248 = scmp.le.s32.totalorder 2, %s15
    // Predicated region
    $region61: #{frequency_time_attention.1} parent=5 // pred_check
      %p2249 = pneg %p2248
    $region62: #{frequency_time_attention.1} parent=5 // pred_check_branch
      %2251 = sbr.rel (%p2249) target = $region64
    $region63: #{frequency_time_attention.1} parent=5 // pred_region
      %s2252 = ssub.s32 %s15, 2
      // Predicated region
      $region65: #{frequency_time_attention.1} parent=63 // pred_check
        %p2253 = pneg %p238
      $region66: #{frequency_time_attention.1} parent=63 // pred_check_branch
        %2255 = sbr.rel (%p2253) target = $region68
      $region67: #{frequency_time_attention.1} parent=63 // pred_region
        %p2256 = scmp.lt.s32.totalorder %s21, 1
        %s2257 = scalar_select %p2256, %s21, 1
        %s2258 = smul.addr %s2257, 8
        %s2259 = smul.addr %s2258, 8
        %s2260 = scalar_lea.vmem %s9, %s2259
      $region68: #{frequency_time_attention.1} parent=63 // pred_fallthru
        _
    $region64: #{frequency_time_attention.1} parent=5 // pred_fallthru
      _
  $region6: #{frequency_time_attention.1} parent=0 // loop_footer
    %s19 = sadd.s32 1, %s15
  $region7: #{frequency_time_attention.1} parent=0 // loop_footer_branch
    %14 = sbr.rel target = $region3
  $region8: #{frequency_time_attention.1} parent=0 // loop_exit
    _

</llo_original>
